<compile_context>
chip_gen: v7x
topology: tpu7x:2x2x1
jax: 0.10.0
libtpu: 0.0.40
codegen_flags: <defaults>
</compile_context>

<pallas_src>
import functools

import jax
import jax.numpy as jnp
from jax.experimental import pallas as pl
from jax.experimental.pallas import tpu as pltpu


# ---------------------------------------------------------------------------
# Kernel
# ---------------------------------------------------------------------------
def se_block_kernel(x_ref, w1_ref, w2_ref, o_ref, *, hw, use_mxu_squeeze):
    """One grid step: full SE transform of a (Bt, C, HWp) slab.

    x_ref:  (Bt, C, HWp)  input slab (HWp = H*W padded to a multiple of 128)
    w1_ref: (C, Cr)       first linear weight (pre-transposed, no bias)
    w2_ref: (Cr, C)       second linear weight (pre-transposed, no bias)
    o_ref:  (Bt, C, HWp)  output slab
    hw:     true (unpadded) H*W used for the mean
    """
    bt, c, hwp = x_ref.shape
    xt = x_ref[...]                                   # native dtype, single load
    inv_hw = jnp.float32(1.0 / hw)

    # --- squeeze: global average pool over spatial positions -----------------
    if use_mxu_squeeze:
        # MXU mat-vec against a ones vector: accumulates in f32 natively, so
        # there is no full-tile f32 temporary and the VPU/XLU slots stay free.
        # Zero spatial padding contributes nothing to the sum; dividing by the
        # true `hw` gives the exact mean.
        ones = jnp.ones((hwp, 1), dtype=xt.dtype)
        ssum = jnp.dot(xt.reshape(bt * c, hwp), ones,
                       preferred_element_type=jnp.float32,
                       precision=jax.lax.Precision.HIGHEST)    # (Bt*C, 1)
        y = ssum.reshape(bt, c) * inv_hw                       # (Bt, C) f32
    else:
        # Fallback when C is not a multiple of 8 (keeps the big-tile reshape
        # layout-free): lane reduce with f32 accumulation.
        y = jnp.sum(xt, axis=-1, dtype=jnp.float32) * inv_hw

    # --- excitation: Linear -> ReLU -> Linear -> Sigmoid (tiny; hidden under
    #     the slab DMA) --------------------------------------------------------
    h = jnp.dot(y, w1_ref[...], preferred_element_type=jnp.float32,
                precision=jax.lax.Precision.HIGHEST)           # (Bt, Cr)
    h = jnp.maximum(h, 0.0)
    s = jnp.dot(h, w2_ref[...], preferred_element_type=jnp.float32,
                precision=jax.lax.Precision.HIGHEST)           # (Bt, C)
    s = jax.nn.sigmoid(s)

    # --- scale: broadcast the per-(batch, channel) gate over spatial dims ----
    # Multiply in the I/O dtype; only the (Bt, C) gate lives in f32.
    o_ref[...] = xt * s[:, :, None].astype(o_ref.dtype)


# ---------------------------------------------------------------------------
# Sizing helpers
# ---------------------------------------------------------------------------
def _round_up(n, m):
    return ((n + m - 1) // m) * m


def _vmem_capacity_bytes():
    """VMEM per TensorCore, clamped to [32, 128] MiB.

    Falls back to 64 MiB (the v7x per-core size — the smallest current
    generation) if the query is unavailable, so the sizing is safe everywhere.
    """
    cap = None
    try:
        info = pltpu.get_tpu_info()
        cap = getattr(info, "vmem_capacity_bytes", None)
    except Exception:
        cap = None
    if not cap:
        cap = 64 * 1024 * 1024
    return int(min(max(int(cap), 32 * 1024 * 1024), 128 * 1024 * 1024))


def _pick_batch_tile(batch, bytes_per_batch_row, per_block_budget):
    """Pick Bt (batch rows per block).

    Goals: (1) block fits the per-block VMEM budget, (2) an even number of
    grid steps (>= 2) so v7x's two TensorCores get balanced work from the
    "parallel" grid axis, (3) minimal batch zero-padding, (4) as few steps as
    possible (amortize the ~0.35 us/step pipeline overhead).  Bt does NOT have
    to divide `batch`; the wrapper pads the batch up to Bt * steps.
    """
    bt_cap = max(1, per_block_budget // max(1, bytes_per_batch_row))
    bt_cap = min(bt_cap, batch)
    if batch < 2:
        return 1
    best = None
    for bt in range(1, bt_cap + 1):
        steps = -(-batch // bt)                 # cdiv
        if steps < 2:
            continue
        pad = steps * bt - batch
        key = (steps % 2 != 0, pad, steps)      # prefer even steps, min pad, min steps
        if best is None or key < best[0]:
            best = (key, bt)
    return 1 if best is None else best[1]


# ---------------------------------------------------------------------------
# Wrapper
# ---------------------------------------------------------------------------
def se_block(x, w1, w2):
    """SE_Block forward.  x: (B, C, H, W); w1: (C, C//r); w2: (C//r, C).

    w1/w2 are the PyTorch nn.Linear weights pre-transposed to (in, out) so the
    kernel computes y @ w — semantics identical to the module.
    Returns an array with the same shape/dtype as x.
    """
    B, C, H, W = x.shape
    HW = H * W
    Cr = w1.shape[1]
    itemsize = jnp.dtype(x.dtype).itemsize

    # ---- lane-dense spatial layout: pad H*W up to a multiple of 128 ---------
    HWp = _round_up(HW, 128)

    # ---- generation-aware VMEM budget / block sizing -------------------------
    cap = _vmem_capacity_bytes()
    # Explicit scoped-VMEM limit, well under physical on every generation
    # (v5e's 16 MiB *default* scoped limit would otherwise reject big blocks).
    vmem_limit = int(min(cap * 0.85, cap - (2 << 20)))
    w_bytes = (w1.size * jnp.dtype(w1.dtype).itemsize
               + w2.size * jnp.dtype(w2.dtype).itemsize)
    # Working set = in + out blocks (double-buffered) + double-buffered
    # weights; keep ~25% of VMEM headroom for gate temporaries / Mosaic scratch.
    usable = int(cap * 0.6) - 2 * w_bytes
    per_block_budget = max(1 << 20, usable // 4)

    bytes_per_batch_row = C * HWp * itemsize
    # TODO(synk): if a single batch row (C*HWp) ever exceeds the per-block
    # budget, the block should additionally be tiled over C or the spatial dim.
    Bt = _pick_batch_tile(B, bytes_per_batch_row, per_block_budget)
    steps = -(-B // Bt)
    B_pad = steps * Bt

    # ---- pad + flatten (zero padding: padded rows/lanes contribute 0 to the
    #      pooled sum and produce 0 output; both are sliced off afterwards) ----
    x_flat = x.reshape(B, C, HW)
    if B_pad != B or HWp != HW:
        x_flat = jnp.pad(x_flat, ((0, B_pad - B), (0, 0), (0, HWp - HW)))

    kernel = functools.partial(se_block_kernel, hw=HW,
                               use_mxu_squeeze=(C % 8 == 0))

    # Advisory cost hint: bandwidth-heavy, FLOP-light custom call.
    cost = pl.CostEstimate(
        flops=int(2 * B_pad * C * HWp          # squeeze mat-vec
                  + 2 * B_pad * C * Cr * 2     # two excitation matmuls
                  + B_pad * C * HWp),          # channel-wise scale
        transcendentals=int(B_pad * C),        # sigmoid
        bytes_accessed=int(2 * B_pad * C * HWp * itemsize + w_bytes),
    )

    out_flat = pl.pallas_call(
        kernel,
        out_shape=jax.ShapeDtypeStruct((B_pad, C, HWp), x.dtype),
        grid_spec=pltpu.PrefetchScalarGridSpec(
            num_scalar_prefetch=0,
            grid=(steps,),
            in_specs=[
                pl.BlockSpec((Bt, C, HWp), lambda b: (b, 0, 0)),
                # Constant index_map: weights stay VMEM-resident, no re-DMA.
                pl.BlockSpec((C, Cr), lambda b: (0, 0)),
                pl.BlockSpec((Cr, C), lambda b: (0, 0)),
            ],
            out_specs=pl.BlockSpec((Bt, C, HWp), lambda b: (b, 0, 0)),
        ),
        compiler_params=pltpu.CompilerParams(
            dimension_semantics=("parallel",),
            vmem_limit_bytes=vmem_limit,
        ),
        cost_estimate=cost,
    )(x_flat, w1, w2)

    return out_flat[:B, :, :HW].reshape(B, C, H, W)


# ---------------------------------------------------------------------------
# Plain-JAX reference mirroring the PyTorch module
# ---------------------------------------------------------------------------
def se_block_ref(x, w1, w2):
    y = jnp.mean(x.astype(jnp.float32), axis=(2, 3))            # AdaptiveAvgPool2d(1)
    y = jnp.maximum(jnp.dot(y, w1.astype(jnp.float32),
                            precision=jax.lax.Precision.HIGHEST), 0.0)
    y = jax.nn.sigmoid(jnp.dot(y, w2.astype(jnp.float32),
                               precision=jax.lax.Precision.HIGHEST))
    return (x * y[:, :, None, None].astype(x.dtype)).astype(x.dtype)


if __name__ == "__main__":
    def _run_case(B, C, H, W, r, key):
        Cr = max(1, C // r)
        kx, k1, k2 = jax.random.split(key, 3)
        x = jax.random.normal(kx, (B, C, H, W), dtype=jnp.float32)
        # nn.Linear stores (out, in); we pass (in, out) so the kernel does y @ W.
        w1 = jax.random.normal(k1, (C, Cr), dtype=jnp.float32) * 0.1
        w2 = jax.random.normal(k2, (Cr, C), dtype=jnp.float32) * 0.1
        out = jax.block_until_ready(se_block(x, w1, w2))
        ref = se_block_ref(x, w1, w2)
        assert out.shape == x.shape and out.dtype == x.dtype
        assert jnp.allclose(out, ref, atol=2e-5, rtol=2e-5), (
            f"mismatch for {(B, C, H, W)}: "
            f"max abs err {float(jnp.max(jnp.abs(out - ref)))}")

    root = jax.random.PRNGKey(0)
    k_a, k_b = jax.random.split(root)
    # Clean path: H*W = 256 (already lane-dense), B=2 -> 2 even grid steps.
    _run_case(2, 32, 16, 16, 16, k_a)
    # Padded path: H*W = 196 -> padded to 256 lanes, B=3 -> padded to 4 (grid 2).
    _run_case(3, 32, 14, 14, 16, k_b)
    print("KERNEL_OK")
</pallas_src>

<mosaic_0001>
module attributes {stable_mosaic.version = 11 : i64} {
  func.func @se_block_kernel(%arg0: i32, %arg1: memref<1x32x256xf32, #tpu.memory_space<vmem>>, %arg2: memref<32x2xf32, #tpu.memory_space<vmem>>, %arg3: memref<2x32xf32, #tpu.memory_space<vmem>>, %arg4: memref<1x32x256xf32, #tpu.memory_space<vmem>>) attributes {dimension_semantics = [#tpu.dimension_semantics<parallel>], iteration_bounds = array<i64: 2>, scalar_prefetch = 0 : i64, scratch_operands = 0 : i64, tpu.core_type = #tpu.core_type<tc>, window_params = [{transform_indices = @transform_0, window_bounds = array<i64: 1, 32, 256>}, {pipeline_mode = #tpu.pipeline_mode<synchronous>, transform_indices = @transform_1, window_bounds = array<i64: 32, 2>}, {pipeline_mode = #tpu.pipeline_mode<synchronous>, transform_indices = @transform_2, window_bounds = array<i64: 2, 32>}, {transform_indices = @transform_3, window_bounds = array<i64: 1, 32, 256>}]} {
    %c0 = arith.constant 0 : index
    %c0_0 = arith.constant 0 : index
    %c0_1 = arith.constant 0 : index
    %0 = vector.load %arg1[%c0, %c0_0, %c0_1] : memref<1x32x256xf32, #tpu.memory_space<vmem>>, vector<1x32x256xf32>
    %cst = arith.constant 1.000000e+00 : f32
    %1 = vector.broadcast %cst : f32 to vector<256x1xf32>
    %2 = vector.shape_cast %0 : vector<1x32x256xf32> to vector<32x256xf32>
    %cst_2 = arith.constant dense<0.000000e+00> : vector<32x1xf32>
    %3 = tpu.matmul %2, %1, %cst_2 {dimension_numbers = #tpu.dot_dimension_numbers<[1], [0], [0], [1], [0, 0, 1, 1], [], []>, precision = #tpu.contract_precision<fp32>} : vector<32x256xf32>, vector<256x1xf32>, vector<32x1xf32> -> vector<32x1xf32>
    %4 = vector.shape_cast %3 : vector<32x1xf32> to vector<1x32xf32>
    %cst_3 = arith.constant 3.906250e-03 : f32
    %5 = vector.broadcast %cst_3 : f32 to vector<1x32xf32>
    %6 = arith.mulf %4, %5 : vector<1x32xf32>
    %c0_4 = arith.constant 0 : index
    %c0_5 = arith.constant 0 : index
    %7 = vector.load %arg2[%c0_4, %c0_5] : memref<32x2xf32, #tpu.memory_space<vmem>>, vector<32x2xf32>
    %cst_6 = arith.constant dense<0.000000e+00> : vector<1x2xf32>
    %8 = tpu.matmul %6, %7, %cst_6 {dimension_numbers = #tpu.dot_dimension_numbers<[1], [0], [0], [1], [0, 0, 1, 1], [], []>, precision = #tpu.contract_precision<fp32>} : vector<1x32xf32>, vector<32x2xf32>, vector<1x2xf32> -> vector<1x2xf32>
    %cst_7 = arith.constant 0.000000e+00 : f32
    %9 = vector.broadcast %cst_7 : f32 to vector<1x2xf32>
    %10 = arith.maximumf %8, %9 : vector<1x2xf32>
    %c0_8 = arith.constant 0 : index
    %c0_9 = arith.constant 0 : index
    %11 = vector.load %arg3[%c0_8, %c0_9] : memref<2x32xf32, #tpu.memory_space<vmem>>, vector<2x32xf32>
    %cst_10 = arith.constant dense<0.000000e+00> : vector<1x32xf32>
    %12 = tpu.matmul %10, %11, %cst_10 {dimension_numbers = #tpu.dot_dimension_numbers<[1], [0], [0], [1], [0, 0, 1, 1], [], []>, precision = #tpu.contract_precision<fp32>} : vector<1x2xf32>, vector<2x32xf32>, vector<1x32xf32> -> vector<1x32xf32>
    %13 = arith.negf %12 : vector<1x32xf32>
    %14 = math.exp %13 : vector<1x32xf32>
    %cst_11 = arith.constant 1.000000e+00 : f32
    %15 = vector.broadcast %cst_11 : f32 to vector<1x32xf32>
    %16 = arith.addf %15, %14 : vector<1x32xf32>
    %17 = arith.divf %15, %16 : vector<1x32xf32>
    %18 = vector.shape_cast %17 : vector<1x32xf32> to vector<1x32x1xf32>
    %19 = vector.broadcast %18 : vector<1x32x1xf32> to vector<1x32x256xf32>
    %20 = arith.mulf %0, %19 : vector<1x32x256xf32>
    %c0_12 = arith.constant 0 : index
    %c0_13 = arith.constant 0 : index
    %c0_14 = arith.constant 0 : index
    %21 = vector.load %arg4[%c0_12, %c0_13, %c0_14] : memref<1x32x256xf32, #tpu.memory_space<vmem>>, vector<1x32x256xf32>
    tpu.vector_store %arg4[%c0_12, %c0_13, %c0_14], %20 {strides = array<i32>} : memref<1x32x256xf32, #tpu.memory_space<vmem>>, vector<1x32x256xf32>,
    return
  }
  func.func @transform_0(%arg0: i32) -> (i32, i32, i32) {
    %c0_i32 = arith.constant 0 : i32
    %c0_i32_0 = arith.constant 0 : i32
    %c0_i32_1 = arith.constant 0 : i32
    return %arg0, %c0_i32, %c0_i32_0 : i32, i32, i32
  }
  func.func @transform_1(%arg0: i32) -> (i32, i32) {
    %c0_i32 = arith.constant 0 : i32
    %c0_i32_0 = arith.constant 0 : i32
    %c0_i32_1 = arith.constant 0 : i32
    return %c0_i32, %c0_i32_0 : i32, i32
  }
  func.func @transform_2(%arg0: i32) -> (i32, i32) {
    %c0_i32 = arith.constant 0 : i32
    %c0_i32_0 = arith.constant 0 : i32
    %c0_i32_1 = arith.constant 0 : i32
    return %c0_i32, %c0_i32_0 : i32, i32
  }
  func.func @transform_3(%arg0: i32) -> (i32, i32, i32) {
    %c0_i32 = arith.constant 0 : i32
    %c0_i32_0 = arith.constant 0 : i32
    %c0_i32_1 = arith.constant 0 : i32
    return %arg0, %c0_i32, %c0_i32_0 : i32, i32, i32
  }
}

</mosaic_0001>

<llo_original>
// kernel: tpu_custom_call.1
$region0: #{tpu_custom_call.1}
  #allocation0 [shape = 'u32[]', space=smem, size = 0x4, offset = 0x4, fixed_abs, tag = 'smem constant byte address 0x4 - core index']
  #allocation1 [shape = 'u32[144,128]{1,0:T(1,128)}', space=vmem, size = 0x12000, scoped, tag = 'internal scratch']
  %s0 = inlined_call_operand.hbm [shape: f32[2,32,256], index: 0, kind: input, shape index: {}]
  %s1 = inlined_call_operand.vmem [shape: f32[32,2], index: 1, kind: input, shape index: {}]
  %s2 = inlined_call_operand.vmem [shape: f32[2,32], index: 2, kind: input, shape index: {}]
  %s3 = inlined_call_operand.hbm [shape: f32[2,32,256], index: 3, kind: output, shape index: {}]
  %s4 = sld [smem:[#allocation0]]
  $region49: #{tpu_custom_call.1} parent=0
    _
  %s6 = ssub.s32 1, %s4
  %s7 = scalar_select 0, %s6, %s4
  $region1: #{tpu_custom_call.1} parent=0
    #allocation2 [shape = 'u8[65536]{0}', space=vmem, size = 0x10000, scoped, tag = 'input window, operand 0']
    #allocation3 [shape = 's32[2]{0}', space=sflag, size = 0x8, scoped, tag = 'scoped memory for tpu_custom_call.1']
    #allocation4 [shape = 's32[2]{0}', space=sflag, size = 0x8, scoped, tag = 'scoped memory for tpu_custom_call.1']
    #allocation5 [shape = 'u8[65536]{0}', space=vmem, size = 0x10000, scoped, tag = 'output window, operand 0']
    %8 = vsyncpa [#allocation3], 0
    %s9 = scalar_lea.sflag [#allocation3], 1
    %10 = vsyncpa %s9, 0
    %11 = vsyncpa [#allocation4], 0
    %s12 = scalar_lea.sflag [#allocation4], 1
    %13 = vsyncpa %s12, 0
    loop: start=0, step=1, limit=4
    $region2: #{tpu_custom_call.1} parent=1 // loop_pre_header
      _
    $region3: #{tpu_custom_call.1} parent=1 // loop_header
      %s15 = sphi 0, %s19
      %p16 = scmp.ge.s32.totalorder %s15, 4
      %s25 = sphi 0, %s27
      %s28 = sphi 0, %s25
      %s29 = sphi 0, %s28
      %s45 = sphi 0, %s29
      %s49 = sphi 0, %s49
      %s51 = sphi 0, %s49
      %s52 = sphi 0, %s51
      %s66 = sphi 0, %s52
      %s70 = sphi 0, %s70
      %s72 = sphi 0, %s70
      %s73 = sphi 0, %s72
      %s87 = sphi 0, %s73
      %s93 = sphi 0, %s95
      %s96 = sphi 0, %s93
      %s97 = sphi 0, %s96
      %s113 = sphi 0, %s97
    $region4: #{tpu_custom_call.1} parent=1 // loop_header_branch
      %18 = sbr.rel (%p16) target = $region8
    $region5: #{tpu_custom_call.1} parent=1 // loop_body
      %s20 = ssub.s32 %s15, 1
      %s21 = ssub.s32 %s15, 2
      %s22 = sadd.s32 %s15, 1
      %s23 = ssub.s32 %s15, %s22
      %p24 = scmp.eq.s32.totalorder %s23, 0
      %s26 = sadd.s32 %s25, 1
      %s27 = scalar_select %p24, %s25, %s26
      %p30 = pneg %p24
      %p31 = scmp.eq.s32.totalorder %s15, 1
      %p32 = por %p30, %p31
      %p33 = scmp.ne.s32.totalorder %s25, %s28
      %p34 = scmp.eq.s32.totalorder %s15, 0
      %p35 = por %p33, %p34
      %p36 = scmp.ne.s32.totalorder %s25, %s28
      %p37 = scmp.eq.s32.totalorder %s20, 1
      %p38 = por %p36, %p37
      %p39 = scmp.ne.s32.totalorder %s28, %s29
      %p40 = scmp.eq.s32.totalorder %s20, 0
      %p41 = por %p39, %p40
      %p42 = scmp.ne.s32.totalorder %s28, %s29
      %p43 = scmp.eq.s32.totalorder %s21, 1
      %p44 = por %p42, %p43
      %p46 = scmp.ne.s32.totalorder %s29, %s45
      %p47 = scmp.eq.s32.totalorder %s21, 0
      %p48 = por %p46, %p47
      %s50 = sadd.s32 %s49, 1
      %p53 = scmp.eq.s32.totalorder %s15, 1
      %p54 = scmp.ne.s32.totalorder %s49, %s51
      %p55 = scmp.eq.s32.totalorder %s15, 0
      %p56 = por %p54, %p55
      %p57 = scmp.ne.s32.totalorder %s49, %s51
      %p58 = scmp.eq.s32.totalorder %s20, 1
      %p59 = por %p57, %p58
      %p60 = scmp.ne.s32.totalorder %s51, %s52
      %p61 = scmp.eq.s32.totalorder %s20, 0
      %p62 = por %p60, %p61
      %p63 = scmp.ne.s32.totalorder %s51, %s52
      %p64 = scmp.eq.s32.totalorder %s21, 1
      %p65 = por %p63, %p64
      %p67 = scmp.ne.s32.totalorder %s52, %s66
      %p68 = scmp.eq.s32.totalorder %s21, 0
      %p69 = por %p67, %p68
      %s71 = sadd.s32 %s70, 1
      %p74 = scmp.eq.s32.totalorder %s15, 1
      %p75 = scmp.ne.s32.totalorder %s70, %s72
      %p76 = scmp.eq.s32.totalorder %s15, 0
      %p77 = por %p75, %p76
      %p78 = scmp.ne.s32.totalorder %s70, %s72
      %p79 = scmp.eq.s32.totalorder %s20, 1
      %p80 = por %p78, %p79
      %p81 = scmp.ne.s32.totalorder %s72, %s73
      %p82 = scmp.eq.s32.totalorder %s20, 0
      %p83 = por %p81, %p82
      %p84 = scmp.ne.s32.totalorder %s72, %s73
      %p85 = scmp.eq.s32.totalorder %s21, 1
      %p86 = por %p84, %p85
      %p88 = scmp.ne.s32.totalorder %s73, %s87
      %p89 = scmp.eq.s32.totalorder %s21, 0
      %p90 = por %p88, %p89
      %s91 = ssub.s32 %s15, %s22
      %p92 = scmp.eq.s32.totalorder %s91, 0
      %s94 = sadd.s32 %s93, 1
      %s95 = scalar_select %p92, %s93, %s94
      %p98 = pneg %p92
      %p99 = scmp.eq.s32.totalorder %s15, 1
      %p100 = por %p98, %p99
      %p101 = scmp.ne.s32.totalorder %s93, %s96
      %p102 = scmp.eq.s32.totalorder %s15, 0
      %p103 = por %p101, %p102
      %p104 = scmp.ne.s32.totalorder %s93, %s96
      %p105 = scmp.eq.s32.totalorder %s20, 1
      %p106 = por %p104, %p105
      %p107 = scmp.ne.s32.totalorder %s96, %s97
      %p108 = scmp.eq.s32.totalorder %s20, 0
      %p109 = por %p107, %p108
      %p110 = scmp.ne.s32.totalorder %s96, %s97
      %p111 = scmp.eq.s32.totalorder %s21, 1
      %p112 = por %p110, %p111
      %p114 = scmp.ne.s32.totalorder %s97, %s113
      %p115 = scmp.eq.s32.totalorder %s21, 0
      %p116 = por %p114, %p115
      %p117 = scmp.le.s32.totalorder 1, %s15
      %p118 = scmp.lt.s32.totalorder %s15, 3
      %p119 = pnand %p117, %p118
      %p120 = pneg %p119
      // Predicated region
      $region9: #{tpu_custom_call.1} parent=5 // pred_check
        _
      $region10: #{tpu_custom_call.1} parent=5 // pred_check_branch
        %122 = sbr.rel (%p119) target = $region12
      $region11: #{tpu_custom_call.1} parent=5 // pred_region
        %s123 = ssub.s32 %s15, 1
        // Predicated region
        $region13: #{tpu_custom_call.1} parent=11 // pred_check
          %p124 = pneg %p62
        $region14: #{tpu_custom_call.1} parent=11 // pred_check_branch
          %126 = sbr.rel (%p124) target = $region16
        $region15: #{tpu_custom_call.1} parent=11 // pred_region
          _
        $region16: #{tpu_custom_call.1} parent=11 // pred_fallthru
          _
        // Predicated region
        $region17: #{tpu_custom_call.1} parent=11 // pred_check
          %p127 = pneg %p83
        $region18: #{tpu_custom_call.1} parent=11 // pred_check_branch
          %129 = sbr.rel (%p127) target = $region20
        $region19: #{tpu_custom_call.1} parent=11 // pred_region
          _
        $region20: #{tpu_custom_call.1} parent=11 // pred_fallthru
          _
      $region12: #{tpu_custom_call.1} parent=5 // pred_fallthru
        _
      %p130 = scmp.lt.s32.totalorder %s15, 2
      // Predicated region
      $region21: #{tpu_custom_call.1} parent=5 // pred_check
        %p131 = pneg %p130
      $region22: #{tpu_custom_call.1} parent=5 // pred_check_branch
        %133 = sbr.rel (%p131) target = $region24
      $region23: #{tpu_custom_call.1} parent=5 // pred_region
        // Predicated region
        $region25: #{tpu_custom_call.1} parent=23 // pred_check
          %p134 = pneg %p35
        $region26: #{tpu_custom_call.1} parent=23 // pred_check_branch
          %136 = sbr.rel (%p134) target = $region28
        $region27: #{tpu_custom_call.1} parent=23 // pred_region
          %s137 = sand.u32 %s25, 1
          %s138 = scalar_lea.sflag [#allocation3], %s137
          %s139 = sand.u32 %s25, 1
          %s140 = smul.addr %s139, 64
          %s141 = scalar_lea.vmem [#allocation2], %s140
          %s143 = ssub.s32 1024, 1024
          %144 = vsyncadd %s138, %s143
          %s145 = smul.addr %s15, 8
          %s146 = smul.addr %s145, 128
          %s147 = scalar_lea.hbm %s0, %s146
          %s148 = sshll.u32 %s141, 4
          %s149 = int_to_ptr.vmem [resolvable:$true] %s148
          %154 = dma.hbm_to_vmem [thread:$0]  %s147, 1024, %s149, %s138, 256, 256, 16
        $region28: #{tpu_custom_call.1} parent=23 // pred_fallthru
          _
      $region24: #{tpu_custom_call.1} parent=5 // pred_fallthru
        _
      %p155 = scmp.le.s32.totalorder 1, %s15
      %p156 = scmp.lt.s32.totalorder %s15, 3
      %p157 = pnand %p155, %p156
      %p158 = pneg %p157
      // Predicated region
      $region29: #{tpu_custom_call.1} parent=5 // pred_check
        _
      $region30: #{tpu_custom_call.1} parent=5 // pred_check_branch
        %160 = sbr.rel (%p157) target = $region32
      $region31: #{tpu_custom_call.1} parent=5 // pred_region
        %s161 = ssub.s32 %s15, 1
        %s162 = sand.u32 %s28, 1
        %s163 = scalar_lea.sflag [#allocation3], %s162
        %s164 = sand.u32 %s28, 1
        %s165 = smul.addr %s164, 64
        %s166 = scalar_lea.vmem [#allocation2], %s165
        // Predicated region
        $region33: #{tpu_custom_call.1} parent=31 // pred_check
          %p167 = pneg %p41
        $region34: #{tpu_custom_call.1} parent=31 // pred_check_branch
          %169 = sbr.rel (%p167) target = $region36
        $region35: #{tpu_custom_call.1} parent=31 // pred_region
          %170 = dma.done %s163, 1024
        $region36: #{tpu_custom_call.1} parent=31 // pred_fallthru
          _
        %s171 = sand.u32 %s28, 1
        %s172 = scalar_lea.sflag [#allocation3], %s171
        %s173 = sand.u32 %s28, 1
        %s174 = smul.addr %s173, 64
        %s175 = scalar_lea.vmem [#allocation2], %s174
        %p176 = pneg %p41
        %p177 = pneg %p38
        %p178 = pneg %p62
        %p179 = pneg %p59
        %p180 = pneg %p83
        %p181 = pneg %p80
        %p182 = pneg %p109
        %p183 = pneg %p106
        %s184 = sand.u32 %s96, 1
        %s185 = scalar_lea.sflag [#allocation4], %s184
        %s186 = sand.u32 %s96, 1
        %s187 = smul.addr %s186, 64
        %s188 = scalar_lea.vmem [#allocation5], %s187
        %v189 = vld [vmem:[%s166] sm:$0xff]
        %v190 = vld [vmem:[%s166 + $0x8] sm:$0xff]
        %v191 = vld [vmem:[%s166 + $0x10] sm:$0xff]
        %v192 = vld [vmem:[%s166 + $0x18] sm:$0xff]
        %v193 = vld [vmem:[%s166 + $0x20] sm:$0xff]
        %v194 = vld [vmem:[%s166 + $0x28] sm:$0xff]
        %v195 = vld [vmem:[%s166 + $0x30] sm:$0xff]
        %v196 = vld [vmem:[%s166 + $0x38] sm:$0xff]
        %197 = vmatprep.subr.mxu0 0.0
        %198 = vmatpush1.msra.mxu0 1.0
        %199 = vmatprep.subr.mxu0 0.0
        %200 = vmatpush1.msra.mxu0 1.0
        %201 = vmatprep.subr.mxu0 0.0
        %202 = vmatpush1.msra.mxu0 1.0
        %203 = vmatprep.subr.mxu0 0.0
        %204 = vmatpush1.msra.mxu0 1.0
        %205 = vmatprep.subr.mxu0 0.0
        %206 = vmatpush1.msra.mxu0 1.0
        %207 = vmatprep.subr.mxu0 0.0
        %208 = vmatpush1.msra.mxu0 1.0
        %209 = vmatprep.subr.mxu0 0.0
        %210 = vmatpush1.msra.mxu0 1.0
        %211 = vmatprep.subr.mxu0 0.0
        %212 = vmatpush1.msra.mxu0 1.0
        %213 = vmatprep.subr.mxu0 0.0
        %214 = vmatpush1.msra.mxu0 1.0
        %215 = vmatprep.subr.mxu0 0.0
        %216 = vmatpush1.msra.mxu0 1.0
        %217 = vmatprep.subr.mxu0 0.0
        %218 = vmatpush1.msra.mxu0 1.0
        %219 = vmatprep.subr.mxu0 0.0
        %220 = vmatpush1.msra.mxu0 1.0
        %221 = vmatprep.subr.mxu0 0.0
        %222 = vmatpush1.msra.mxu0 1.0
        %223 = vmatprep.subr.mxu0 0.0
        %224 = vmatpush1.msra.mxu0 1.0
        %225 = vmatprep.subr.mxu0 0.0
        %226 = vmatpush1.msra.mxu0 1.0
        %227 = vmatprep.subr.mxu0 0.0
        %228 = vmatpush1.msra.mxu0 1.0
        %229 = vmatprep.subr.mxu0 0.0
        %230 = vmatpush1.msra.mxu0 1.0
        %231 = vmatprep.subr.mxu0 0.0
        %232 = vmatpush1.msra.mxu0 1.0
        %233 = vmatprep.subr.mxu0 0.0
        %234 = vmatpush1.msra.mxu0 1.0
        %235 = vmatprep.subr.mxu0 0.0
        %236 = vmatpush1.msra.mxu0 1.0
        %237 = vmatprep.subr.mxu0 0.0
        %238 = vmatpush1.msra.mxu0 1.0
        %239 = vmatprep.subr.mxu0 0.0
        %240 = vmatpush1.msra.mxu0 1.0
        %241 = vmatprep.subr.mxu0 0.0
        %242 = vmatpush1.msra.mxu0 1.0
        %243 = vmatprep.subr.mxu0 0.0
        %244 = vmatpush1.msra.mxu0 1.0
        %245 = vmatprep.subr.mxu0 0.0
        %246 = vmatpush1.msra.mxu0 1.0
        %247 = vmatprep.subr.mxu0 0.0
        %248 = vmatpush1.msra.mxu0 1.0
        %249 = vmatprep.subr.mxu0 0.0
        %250 = vmatpush1.msra.mxu0 1.0
        %251 = vmatprep.subr.mxu0 0.0
        %252 = vmatpush1.msra.mxu0 1.0
        %253 = vmatprep.subr.mxu0 0.0
        %254 = vmatpush1.msra.mxu0 1.0
        %255 = vmatprep.subr.mxu0 0.0
        %256 = vmatpush1.msra.mxu0 1.0
        %257 = vmatprep.subr.mxu0 0.0
        %258 = vmatpush1.msra.mxu0 1.0
        %259 = vmatprep.subr.mxu0 0.0
        %260 = vmatpush1.msra.mxu0 1.0
        %v261 = vand.u32 %v190, 4294901760
        %v262 = vsub.f32 %v190, %v261
        %v263 = vand.u32 %v262, 4294901760
        %v264 = vsub.f32 %v262, %v263
        %v265 = vand.u32 %v264, 4294901760
        %266 = vmatprep.mubr.f32.mxu0 %v265
        %v267 = vand.u32 %v189, 4294901760
        %v268 = vsub.f32 %v189, %v267
        %v269 = vand.u32 %v268, 4294901760
        %v270 = vsub.f32 %v268, %v269
        %v271 = vand.u32 %v270, 4294901760
        %272 = vmatmul.mubr.f32.gmra.mrb[0].mxu0 %v271
        %v273 = vpop.f32.mrb[0].mxu0
        %v274 = vadd.f32 0.0, %v273
        %v275 = vpop.f32.mrb[0].mxu0
        %v276 = vand.u32 %v192, 4294901760
        %v277 = vsub.f32 %v192, %v276
        %v278 = vand.u32 %v277, 4294901760
        %v279 = vsub.f32 %v277, %v278
        %v280 = vand.u32 %v279, 4294901760
        %281 = vmatprep.mubr.f32.mxu0 %v280
        %v282 = vand.u32 %v191, 4294901760
        %v283 = vsub.f32 %v191, %v282
        %v284 = vand.u32 %v283, 4294901760
        %v285 = vsub.f32 %v283, %v284
        %v286 = vand.u32 %v285, 4294901760
        %287 = vmatmul.mubr.f32.gmra.mrb[0].mxu0 %v286
        %v288 = vpop.f32.mrb[0].mxu0
        %v289 = vadd.f32 0.0, %v288
        %v290 = vpop.f32.mrb[0].mxu0
        %v291 = vand.u32 %v194, 4294901760
        %v292 = vsub.f32 %v194, %v291
        %v293 = vand.u32 %v292, 4294901760
        %v294 = vsub.f32 %v292, %v293
        %v295 = vand.u32 %v294, 4294901760
        %296 = vmatprep.mubr.f32.mxu0 %v295
        %v297 = vand.u32 %v193, 4294901760
        %v298 = vsub.f32 %v193, %v297
        %v299 = vand.u32 %v298, 4294901760
        %v300 = vsub.f32 %v298, %v299
        %v301 = vand.u32 %v300, 4294901760
        %302 = vmatmul.mubr.f32.gmra.mrb[0].mxu0 %v301
        %v303 = vpop.f32.mrb[0].mxu0
        %v304 = vadd.f32 0.0, %v303
        %v305 = vpop.f32.mrb[0].mxu0
        %v306 = vand.u32 %v196, 4294901760
        %v307 = vsub.f32 %v196, %v306
        %v308 = vand.u32 %v307, 4294901760
        %v309 = vsub.f32 %v307, %v308
        %v310 = vand.u32 %v309, 4294901760
        %311 = vmatprep.mubr.f32.mxu0 %v310
        %v312 = vand.u32 %v195, 4294901760
        %v313 = vsub.f32 %v195, %v312
        %v314 = vand.u32 %v313, 4294901760
        %v315 = vsub.f32 %v313, %v314
        %v316 = vand.u32 %v315, 4294901760
        %317 = vmatmul.mubr.f32.gmra.mrb[0].mxu0 %v316
        %v318 = vpop.f32.mrb[0].mxu0
        %v319 = vadd.f32 0.0, %v318
        %v320 = vpop.f32.mrb[0].mxu0
        %321 = vdwg.mxu0
        %322 = vmatprep.subr.mxu0 0.0
        %323 = vmatpush1.msra.mxu0 0.0
        %324 = vmatprep.subr.mxu0 0.0
        %325 = vmatpush1.msra.mxu0 0.0
        %326 = vmatprep.subr.mxu0 0.0
        %327 = vmatpush1.msra.mxu0 0.0
        %328 = vmatprep.subr.mxu0 0.0
        %329 = vmatpush1.msra.mxu0 0.0
        %330 = vmatprep.subr.mxu0 0.0
        %331 = vmatpush1.msra.mxu0 0.0
        %332 = vmatprep.subr.mxu0 0.0
        %333 = vmatpush1.msra.mxu0 0.0
        %334 = vmatprep.subr.mxu0 0.0
        %335 = vmatpush1.msra.mxu0 0.0
        %336 = vmatprep.subr.mxu0 0.0
        %337 = vmatpush1.msra.mxu0 0.0
        %338 = vmatprep.subr.mxu0 0.0
        %339 = vmatpush1.msra.mxu0 0.0
        %340 = vmatprep.subr.mxu0 0.0
        %341 = vmatpush1.msra.mxu0 0.0
        %342 = vmatprep.subr.mxu0 0.0
        %343 = vmatpush1.msra.mxu0 0.0
        %344 = vmatprep.subr.mxu0 0.0
        %345 = vmatpush1.msra.mxu0 0.0
        %346 = vmatprep.subr.mxu0 0.0
        %347 = vmatpush1.msra.mxu0 0.0
        %348 = vmatprep.subr.mxu0 0.0
        %349 = vmatpush1.msra.mxu0 0.0
        %350 = vmatprep.subr.mxu0 0.0
        %351 = vmatpush1.msra.mxu0 0.0
        %352 = vmatprep.subr.mxu0 0.0
        %353 = vmatpush1.msra.mxu0 0.0
        %354 = vmatprep.subr.mxu0 0.0
        %355 = vmatpush1.msra.mxu0 0.0
        %356 = vmatprep.subr.mxu0 0.0
        %357 = vmatpush1.msra.mxu0 0.0
        %358 = vmatprep.subr.mxu0 0.0
        %359 = vmatpush1.msra.mxu0 0.0
        %360 = vmatprep.subr.mxu0 0.0
        %361 = vmatpush1.msra.mxu0 0.0
        %362 = vmatprep.subr.mxu0 0.0
        %363 = vmatpush1.msra.mxu0 0.0
        %364 = vmatprep.subr.mxu0 0.0
        %365 = vmatpush1.msra.mxu0 0.0
        %366 = vmatprep.subr.mxu0 0.0
        %367 = vmatpush1.msra.mxu0 0.0
        %368 = vmatprep.subr.mxu0 0.0
        %369 = vmatpush1.msra.mxu0 0.0
        %370 = vmatprep.subr.mxu0 0.0
        %371 = vmatpush1.msra.mxu0 0.0
        %372 = vmatprep.subr.mxu0 0.0
        %373 = vmatpush1.msra.mxu0 0.0
        %374 = vmatprep.subr.mxu0 0.0
        %375 = vmatpush1.msra.mxu0 0.0
        %376 = vmatprep.subr.mxu0 0.0
        %377 = vmatpush1.msra.mxu0 0.0
        %378 = vmatprep.subr.mxu0 0.0
        %379 = vmatpush1.msra.mxu0 0.0
        %380 = vmatprep.subr.mxu0 0.0
        %381 = vmatpush1.msra.mxu0 0.0
        %382 = vmatprep.subr.mxu0 0.0
        %383 = vmatpush1.msra.mxu0 0.0
        %384 = vmatprep.subr.mxu0 0.0
        %385 = vmatpush1.msra.mxu0 0.0
        %v386 = vand.u32 %v190, 4294901760
        %387 = vmatprep.mubr.f32.mxu0 %v386
        %v388 = vand.u32 %v189, 4294901760
        %389 = vmatmul.mubr.f32.gmra.mrb[0].mxu0 %v388
        %v390 = vpop.f32.mrb[0].mxu0
        %v391 = vadd.f32 %v274, %v390
        %v392 = vpop.f32.mrb[0].mxu0
        %v393 = vand.u32 %v192, 4294901760
        %394 = vmatprep.mubr.f32.mxu0 %v393
        %v395 = vand.u32 %v191, 4294901760
        %396 = vmatmul.mubr.f32.gmra.mrb[0].mxu0 %v395
        %v397 = vpop.f32.mrb[0].mxu0
        %v398 = vadd.f32 %v289, %v397
        %v399 = vpop.f32.mrb[0].mxu0
        %v400 = vand.u32 %v194, 4294901760
        %401 = vmatprep.mubr.f32.mxu0 %v400
        %v402 = vand.u32 %v193, 4294901760
        %403 = vmatmul.mubr.f32.gmra.mrb[0].mxu0 %v402
        %v404 = vpop.f32.mrb[0].mxu0
        %v405 = vadd.f32 %v304, %v404
        %v406 = vpop.f32.mrb[0].mxu0
        %v407 = vand.u32 %v196, 4294901760
        %408 = vmatprep.mubr.f32.mxu0 %v407
        %v409 = vand.u32 %v195, 4294901760
        %410 = vmatmul.mubr.f32.gmra.mrb[0].mxu0 %v409
        %v411 = vpop.f32.mrb[0].mxu0
        %v412 = vadd.f32 %v319, %v411
        %v413 = vpop.f32.mrb[0].mxu0
        %414 = vdwg.mxu0
        %415 = vmatprep.subr.mxu0 0.0
        %416 = vmatpush1.msra.mxu0 0.0
        %417 = vmatprep.subr.mxu0 0.0
        %418 = vmatpush1.msra.mxu0 0.0
        %419 = vmatprep.subr.mxu0 0.0
        %420 = vmatpush1.msra.mxu0 0.0
        %421 = vmatprep.subr.mxu0 0.0
        %422 = vmatpush1.msra.mxu0 0.0
        %423 = vmatprep.subr.mxu0 0.0
        %424 = vmatpush1.msra.mxu0 0.0
        %425 = vmatprep.subr.mxu0 0.0
        %426 = vmatpush1.msra.mxu0 0.0
        %427 = vmatprep.subr.mxu0 0.0
        %428 = vmatpush1.msra.mxu0 0.0
        %429 = vmatprep.subr.mxu0 0.0
        %430 = vmatpush1.msra.mxu0 0.0
        %431 = vmatprep.subr.mxu0 0.0
        %432 = vmatpush1.msra.mxu0 0.0
        %433 = vmatprep.subr.mxu0 0.0
        %434 = vmatpush1.msra.mxu0 0.0
        %435 = vmatprep.subr.mxu0 0.0
        %436 = vmatpush1.msra.mxu0 0.0
        %437 = vmatprep.subr.mxu0 0.0
        %438 = vmatpush1.msra.mxu0 0.0
        %439 = vmatprep.subr.mxu0 0.0
        %440 = vmatpush1.msra.mxu0 0.0
        %441 = vmatprep.subr.mxu0 0.0
        %442 = vmatpush1.msra.mxu0 0.0
        %443 = vmatprep.subr.mxu0 0.0
        %444 = vmatpush1.msra.mxu0 0.0
        %445 = vmatprep.subr.mxu0 0.0
        %446 = vmatpush1.msra.mxu0 0.0
        %447 = vmatprep.subr.mxu0 0.0
        %448 = vmatpush1.msra.mxu0 0.0
        %449 = vmatprep.subr.mxu0 0.0
        %450 = vmatpush1.msra.mxu0 0.0
        %451 = vmatprep.subr.mxu0 0.0
        %452 = vmatpush1.msra.mxu0 0.0
        %453 = vmatprep.subr.mxu0 0.0
        %454 = vmatpush1.msra.mxu0 0.0
        %455 = vmatprep.subr.mxu0 0.0
        %456 = vmatpush1.msra.mxu0 0.0
        %457 = vmatprep.subr.mxu0 0.0
        %458 = vmatpush1.msra.mxu0 0.0
        %459 = vmatprep.subr.mxu0 0.0
        %460 = vmatpush1.msra.mxu0 0.0
        %461 = vmatprep.subr.mxu0 0.0
        %462 = vmatpush1.msra.mxu0 0.0
        %463 = vmatprep.subr.mxu0 0.0
        %464 = vmatpush1.msra.mxu0 0.0
        %465 = vmatprep.subr.mxu0 0.0
        %466 = vmatpush1.msra.mxu0 0.0
        %467 = vmatprep.subr.mxu0 0.0
        %468 = vmatpush1.msra.mxu0 0.0
        %469 = vmatprep.subr.mxu0 0.0
        %470 = vmatpush1.msra.mxu0 0.0
        %471 = vmatprep.subr.mxu0 0.0
        %472 = vmatpush1.msra.mxu0 0.0
        %473 = vmatprep.subr.mxu0 0.0
        %474 = vmatpush1.msra.mxu0 0.0
        %475 = vmatprep.subr.mxu0 0.0
        %476 = vmatpush1.msra.mxu0 0.0
        %477 = vmatprep.subr.mxu0 0.0
        %478 = vmatpush1.msra.mxu0 0.0
        %v479 = vand.u32 %v190, 4294901760
        %v480 = vsub.f32 %v190, %v479
        %481 = vmatprep.mubr.f32.mxu0 %v480
        %v482 = vand.u32 %v189, 4294901760
        %v483 = vsub.f32 %v189, %v482
        %484 = vmatmul.mubr.f32.gmra.mrb[0].mxu0 %v483
        %v485 = vpop.f32.mrb[0].mxu0
        %v486 = vadd.f32 %v391, %v485
        %v487 = vpop.f32.mrb[0].mxu0
        %v488 = vand.u32 %v192, 4294901760
        %v489 = vsub.f32 %v192, %v488
        %490 = vmatprep.mubr.f32.mxu0 %v489
        %v491 = vand.u32 %v191, 4294901760
        %v492 = vsub.f32 %v191, %v491
        %493 = vmatmul.mubr.f32.gmra.mrb[0].mxu0 %v492
        %v494 = vpop.f32.mrb[0].mxu0
        %v495 = vadd.f32 %v398, %v494
        %v496 = vpop.f32.mrb[0].mxu0
        %v497 = vand.u32 %v194, 4294901760
        %v498 = vsub.f32 %v194, %v497
        %499 = vmatprep.mubr.f32.mxu0 %v498
        %v500 = vand.u32 %v193, 4294901760
        %v501 = vsub.f32 %v193, %v500
        %502 = vmatmul.mubr.f32.gmra.mrb[0].mxu0 %v501
        %v503 = vpop.f32.mrb[0].mxu0
        %v504 = vadd.f32 %v405, %v503
        %v505 = vpop.f32.mrb[0].mxu0
        %v506 = vand.u32 %v196, 4294901760
        %v507 = vsub.f32 %v196, %v506
        %508 = vmatprep.mubr.f32.mxu0 %v507
        %v509 = vand.u32 %v195, 4294901760
        %v510 = vsub.f32 %v195, %v509
        %511 = vmatmul.mubr.f32.gmra.mrb[0].mxu0 %v510
        %v512 = vpop.f32.mrb[0].mxu0
        %v513 = vadd.f32 %v412, %v512
        %v514 = vpop.f32.mrb[0].mxu0
        %515 = vdwg.mxu0
        %516 = vmatprep.subr.mxu0 0.0
        %517 = vmatpush1.msra.mxu0 1.0
        %518 = vmatprep.subr.mxu0 0.0
        %519 = vmatpush1.msra.mxu0 1.0
        %520 = vmatprep.subr.mxu0 0.0
        %521 = vmatpush1.msra.mxu0 1.0
        %522 = vmatprep.subr.mxu0 0.0
        %523 = vmatpush1.msra.mxu0 1.0
        %524 = vmatprep.subr.mxu0 0.0
        %525 = vmatpush1.msra.mxu0 1.0
        %526 = vmatprep.subr.mxu0 0.0
        %527 = vmatpush1.msra.mxu0 1.0
        %528 = vmatprep.subr.mxu0 0.0
        %529 = vmatpush1.msra.mxu0 1.0
        %530 = vmatprep.subr.mxu0 0.0
        %531 = vmatpush1.msra.mxu0 1.0
        %532 = vmatprep.subr.mxu0 0.0
        %533 = vmatpush1.msra.mxu0 1.0
        %534 = vmatprep.subr.mxu0 0.0
        %535 = vmatpush1.msra.mxu0 1.0
        %536 = vmatprep.subr.mxu0 0.0
        %537 = vmatpush1.msra.mxu0 1.0
        %538 = vmatprep.subr.mxu0 0.0
        %539 = vmatpush1.msra.mxu0 1.0
        %540 = vmatprep.subr.mxu0 0.0
        %541 = vmatpush1.msra.mxu0 1.0
        %542 = vmatprep.subr.mxu0 0.0
        %543 = vmatpush1.msra.mxu0 1.0
        %544 = vmatprep.subr.mxu0 0.0
        %545 = vmatpush1.msra.mxu0 1.0
        %546 = vmatprep.subr.mxu0 0.0
        %547 = vmatpush1.msra.mxu0 1.0
        %548 = vmatprep.subr.mxu0 0.0
        %549 = vmatpush1.msra.mxu0 1.0
        %550 = vmatprep.subr.mxu0 0.0
        %551 = vmatpush1.msra.mxu0 1.0
        %552 = vmatprep.subr.mxu0 0.0
        %553 = vmatpush1.msra.mxu0 1.0
        %554 = vmatprep.subr.mxu0 0.0
        %555 = vmatpush1.msra.mxu0 1.0
        %556 = vmatprep.subr.mxu0 0.0
        %557 = vmatpush1.msra.mxu0 1.0
        %558 = vmatprep.subr.mxu0 0.0
        %559 = vmatpush1.msra.mxu0 1.0
        %560 = vmatprep.subr.mxu0 0.0
        %561 = vmatpush1.msra.mxu0 1.0
        %562 = vmatprep.subr.mxu0 0.0
        %563 = vmatpush1.msra.mxu0 1.0
        %564 = vmatprep.subr.mxu0 0.0
        %565 = vmatpush1.msra.mxu0 1.0
        %566 = vmatprep.subr.mxu0 0.0
        %567 = vmatpush1.msra.mxu0 1.0
        %568 = vmatprep.subr.mxu0 0.0
        %569 = vmatpush1.msra.mxu0 1.0
        %570 = vmatprep.subr.mxu0 0.0
        %571 = vmatpush1.msra.mxu0 1.0
        %572 = vmatprep.subr.mxu0 0.0
        %573 = vmatpush1.msra.mxu0 1.0
        %574 = vmatprep.subr.mxu0 0.0
        %575 = vmatpush1.msra.mxu0 1.0
        %576 = vmatprep.subr.mxu0 0.0
        %577 = vmatpush1.msra.mxu0 1.0
        %578 = vmatprep.subr.mxu0 0.0
        %579 = vmatpush1.msra.mxu0 1.0
        %v580 = vand.u32 %v190, 4294901760
        %v581 = vsub.f32 %v190, %v580
        %v582 = vand.u32 %v581, 4294901760
        %583 = vmatprep.mubr.f32.mxu0 %v582
        %v584 = vand.u32 %v189, 4294901760
        %v585 = vsub.f32 %v189, %v584
        %v586 = vand.u32 %v585, 4294901760
        %587 = vmatmul.mubr.f32.gmra.mrb[0].mxu0 %v586
        %v588 = vpop.f32.mrb[0].mxu0
        %v589 = vadd.f32 %v486, %v588
        %v590 = vpop.f32.mrb[0].mxu0
        %v591 = vand.u32 %v192, 4294901760
        %v592 = vsub.f32 %v192, %v591
        %v593 = vand.u32 %v592, 4294901760
        %594 = vmatprep.mubr.f32.mxu0 %v593
        %v595 = vand.u32 %v191, 4294901760
        %v596 = vsub.f32 %v191, %v595
        %v597 = vand.u32 %v596, 4294901760
        %598 = vmatmul.mubr.f32.gmra.mrb[0].mxu0 %v597
        %v599 = vpop.f32.mrb[0].mxu0
        %v600 = vadd.f32 %v495, %v599
        %v601 = vpop.f32.mrb[0].mxu0
        %v602 = vand.u32 %v194, 4294901760
        %v603 = vsub.f32 %v194, %v602
        %v604 = vand.u32 %v603, 4294901760
        %605 = vmatprep.mubr.f32.mxu0 %v604
        %v606 = vand.u32 %v193, 4294901760
        %v607 = vsub.f32 %v193, %v606
        %v608 = vand.u32 %v607, 4294901760
        %609 = vmatmul.mubr.f32.gmra.mrb[0].mxu0 %v608
        %v610 = vpop.f32.mrb[0].mxu0
        %v611 = vadd.f32 %v504, %v610
        %v612 = vpop.f32.mrb[0].mxu0
        %v613 = vand.u32 %v196, 4294901760
        %v614 = vsub.f32 %v196, %v613
        %v615 = vand.u32 %v614, 4294901760
        %616 = vmatprep.mubr.f32.mxu0 %v615
        %v617 = vand.u32 %v195, 4294901760
        %v618 = vsub.f32 %v195, %v617
        %v619 = vand.u32 %v618, 4294901760
        %620 = vmatmul.mubr.f32.gmra.mrb[0].mxu0 %v619
        %v621 = vpop.f32.mrb[0].mxu0
        %v622 = vadd.f32 %v513, %v621
        %v623 = vpop.f32.mrb[0].mxu0
        %624 = vdwg.mxu0
        %625 = vmatprep.subr.mxu0 0.0
        %626 = vmatpush1.msra.mxu0 0.0
        %627 = vmatprep.subr.mxu0 0.0
        %628 = vmatpush1.msra.mxu0 0.0
        %629 = vmatprep.subr.mxu0 0.0
        %630 = vmatpush1.msra.mxu0 0.0
        %631 = vmatprep.subr.mxu0 0.0
        %632 = vmatpush1.msra.mxu0 0.0
        %633 = vmatprep.subr.mxu0 0.0
        %634 = vmatpush1.msra.mxu0 0.0
        %635 = vmatprep.subr.mxu0 0.0
        %636 = vmatpush1.msra.mxu0 0.0
        %637 = vmatprep.subr.mxu0 0.0
        %638 = vmatpush1.msra.mxu0 0.0
        %639 = vmatprep.subr.mxu0 0.0
        %640 = vmatpush1.msra.mxu0 0.0
        %641 = vmatprep.subr.mxu0 0.0
        %642 = vmatpush1.msra.mxu0 0.0
        %643 = vmatprep.subr.mxu0 0.0
        %644 = vmatpush1.msra.mxu0 0.0
        %645 = vmatprep.subr.mxu0 0.0
        %646 = vmatpush1.msra.mxu0 0.0
        %647 = vmatprep.subr.mxu0 0.0
        %648 = vmatpush1.msra.mxu0 0.0
        %649 = vmatprep.subr.mxu0 0.0
        %650 = vmatpush1.msra.mxu0 0.0
        %651 = vmatprep.subr.mxu0 0.0
        %652 = vmatpush1.msra.mxu0 0.0
        %653 = vmatprep.subr.mxu0 0.0
        %654 = vmatpush1.msra.mxu0 0.0
        %655 = vmatprep.subr.mxu0 0.0
        %656 = vmatpush1.msra.mxu0 0.0
        %657 = vmatprep.subr.mxu0 0.0
        %658 = vmatpush1.msra.mxu0 0.0
        %659 = vmatprep.subr.mxu0 0.0
        %660 = vmatpush1.msra.mxu0 0.0
        %661 = vmatprep.subr.mxu0 0.0
        %662 = vmatpush1.msra.mxu0 0.0
        %663 = vmatprep.subr.mxu0 0.0
        %664 = vmatpush1.msra.mxu0 0.0
        %665 = vmatprep.subr.mxu0 0.0
        %666 = vmatpush1.msra.mxu0 0.0
        %667 = vmatprep.subr.mxu0 0.0
        %668 = vmatpush1.msra.mxu0 0.0
        %669 = vmatprep.subr.mxu0 0.0
        %670 = vmatpush1.msra.mxu0 0.0
        %671 = vmatprep.subr.mxu0 0.0
        %672 = vmatpush1.msra.mxu0 0.0
        %673 = vmatprep.subr.mxu0 0.0
        %674 = vmatpush1.msra.mxu0 0.0
        %675 = vmatprep.subr.mxu0 0.0
        %676 = vmatpush1.msra.mxu0 0.0
        %677 = vmatprep.subr.mxu0 0.0
        %678 = vmatpush1.msra.mxu0 0.0
        %679 = vmatprep.subr.mxu0 0.0
        %680 = vmatpush1.msra.mxu0 0.0
        %681 = vmatprep.subr.mxu0 0.0
        %682 = vmatpush1.msra.mxu0 0.0
        %683 = vmatprep.subr.mxu0 0.0
        %684 = vmatpush1.msra.mxu0 0.0
        %685 = vmatprep.subr.mxu0 0.0
        %686 = vmatpush1.msra.mxu0 0.0
        %687 = vmatprep.subr.mxu0 0.0
        %688 = vmatpush1.msra.mxu0 0.0
        %v689 = vand.u32 %v190, 4294901760
        %690 = vmatprep.mubr.f32.mxu0 %v689
        %v691 = vand.u32 %v189, 4294901760
        %692 = vmatmul.mubr.f32.gmra.mrb[0].mxu0 %v691
        %v693 = vpop.f32.mrb[0].mxu0
        %v694 = vadd.f32 %v589, %v693
        %v695 = vpop.f32.mrb[0].mxu0
        %v696 = vand.u32 %v192, 4294901760
        %697 = vmatprep.mubr.f32.mxu0 %v696
        %v698 = vand.u32 %v191, 4294901760
        %699 = vmatmul.mubr.f32.gmra.mrb[0].mxu0 %v698
        %v700 = vpop.f32.mrb[0].mxu0
        %v701 = vadd.f32 %v600, %v700
        %v702 = vpop.f32.mrb[0].mxu0
        %v703 = vand.u32 %v194, 4294901760
        %704 = vmatprep.mubr.f32.mxu0 %v703
        %v705 = vand.u32 %v193, 4294901760
        %706 = vmatmul.mubr.f32.gmra.mrb[0].mxu0 %v705
        %v707 = vpop.f32.mrb[0].mxu0
        %v708 = vadd.f32 %v611, %v707
        %v709 = vpop.f32.mrb[0].mxu0
        %v710 = vand.u32 %v196, 4294901760
        %711 = vmatprep.mubr.f32.mxu0 %v710
        %v712 = vand.u32 %v195, 4294901760
        %713 = vmatmul.mubr.f32.gmra.mrb[0].mxu0 %v712
        %v714 = vpop.f32.mrb[0].mxu0
        %v715 = vadd.f32 %v622, %v714
        %v716 = vpop.f32.mrb[0].mxu0
        %717 = vdwg.mxu0
        %718 = vmatprep.subr.mxu0 0.0
        %719 = vmatpush1.msra.mxu0 1.0
        %720 = vmatprep.subr.mxu0 0.0
        %721 = vmatpush1.msra.mxu0 1.0
        %722 = vmatprep.subr.mxu0 0.0
        %723 = vmatpush1.msra.mxu0 1.0
        %724 = vmatprep.subr.mxu0 0.0
        %725 = vmatpush1.msra.mxu0 1.0
        %726 = vmatprep.subr.mxu0 0.0
        %727 = vmatpush1.msra.mxu0 1.0
        %728 = vmatprep.subr.mxu0 0.0
        %729 = vmatpush1.msra.mxu0 1.0
        %730 = vmatprep.subr.mxu0 0.0
        %731 = vmatpush1.msra.mxu0 1.0
        %732 = vmatprep.subr.mxu0 0.0
        %733 = vmatpush1.msra.mxu0 1.0
        %734 = vmatprep.subr.mxu0 0.0
        %735 = vmatpush1.msra.mxu0 1.0
        %736 = vmatprep.subr.mxu0 0.0
        %737 = vmatpush1.msra.mxu0 1.0
        %738 = vmatprep.subr.mxu0 0.0
        %739 = vmatpush1.msra.mxu0 1.0
        %740 = vmatprep.subr.mxu0 0.0
        %741 = vmatpush1.msra.mxu0 1.0
        %742 = vmatprep.subr.mxu0 0.0
        %743 = vmatpush1.msra.mxu0 1.0
        %744 = vmatprep.subr.mxu0 0.0
        %745 = vmatpush1.msra.mxu0 1.0
        %746 = vmatprep.subr.mxu0 0.0
        %747 = vmatpush1.msra.mxu0 1.0
        %748 = vmatprep.subr.mxu0 0.0
        %749 = vmatpush1.msra.mxu0 1.0
        %750 = vmatprep.subr.mxu0 0.0
        %751 = vmatpush1.msra.mxu0 1.0
        %752 = vmatprep.subr.mxu0 0.0
        %753 = vmatpush1.msra.mxu0 1.0
        %754 = vmatprep.subr.mxu0 0.0
        %755 = vmatpush1.msra.mxu0 1.0
        %756 = vmatprep.subr.mxu0 0.0
        %757 = vmatpush1.msra.mxu0 1.0
        %758 = vmatprep.subr.mxu0 0.0
        %759 = vmatpush1.msra.mxu0 1.0
        %760 = vmatprep.subr.mxu0 0.0
        %761 = vmatpush1.msra.mxu0 1.0
        %762 = vmatprep.subr.mxu0 0.0
        %763 = vmatpush1.msra.mxu0 1.0
        %764 = vmatprep.subr.mxu0 0.0
        %765 = vmatpush1.msra.mxu0 1.0
        %766 = vmatprep.subr.mxu0 0.0
        %767 = vmatpush1.msra.mxu0 1.0
        %768 = vmatprep.subr.mxu0 0.0
        %769 = vmatpush1.msra.mxu0 1.0
        %770 = vmatprep.subr.mxu0 0.0
        %771 = vmatpush1.msra.mxu0 1.0
        %772 = vmatprep.subr.mxu0 0.0
        %773 = vmatpush1.msra.mxu0 1.0
        %774 = vmatprep.subr.mxu0 0.0
        %775 = vmatpush1.msra.mxu0 1.0
        %776 = vmatprep.subr.mxu0 0.0
        %777 = vmatpush1.msra.mxu0 1.0
        %778 = vmatprep.subr.mxu0 0.0
        %779 = vmatpush1.msra.mxu0 1.0
        %780 = vmatprep.subr.mxu0 0.0
        %781 = vmatpush1.msra.mxu0 1.0
        %v782 = vand.u32 %v190, 4294901760
        %783 = vmatprep.mubr.f32.mxu0 %v782
        %v784 = vand.u32 %v189, 4294901760
        %785 = vmatmul.mubr.f32.gmra.mrb[0].mxu0 %v784
        %v786 = vpop.f32.mrb[0].mxu0
        %v787 = vadd.f32 %v694, %v786
        %v788 = vpop.f32.mrb[0].mxu0
        %v789 = vand.u32 %v192, 4294901760
        %790 = vmatprep.mubr.f32.mxu0 %v789
        %v791 = vand.u32 %v191, 4294901760
        %792 = vmatmul.mubr.f32.gmra.mrb[0].mxu0 %v791
        %v793 = vpop.f32.mrb[0].mxu0
        %v794 = vadd.f32 %v701, %v793
        %v795 = vpop.f32.mrb[0].mxu0
        %v796 = vand.u32 %v194, 4294901760
        %797 = vmatprep.mubr.f32.mxu0 %v796
        %v798 = vand.u32 %v193, 4294901760
        %799 = vmatmul.mubr.f32.gmra.mrb[0].mxu0 %v798
        %v800 = vpop.f32.mrb[0].mxu0
        %v801 = vadd.f32 %v708, %v800
        %v802 = vpop.f32.mrb[0].mxu0
        %v803 = vand.u32 %v196, 4294901760
        %804 = vmatprep.mubr.f32.mxu0 %v803
        %v805 = vand.u32 %v195, 4294901760
        %806 = vmatmul.mubr.f32.gmra.mrb[0].mxu0 %v805
        %v807 = vpop.f32.mrb[0].mxu0
        %v808 = vadd.f32 %v715, %v807
        %v809 = vpop.f32.mrb[0].mxu0
        %810 = vdwg.mxu0
        %v811 = vmul.f32 %v787, 0.00390625
        %v812 = vmul.f32 %v794, 0.00390625
        %v813 = vmul.f32 %v801, 0.00390625
        %v814 = vmul.f32 %v808, 0.00390625
        %v815 = vld [vmem:[%s1] sm:$0xff]
        %v816 = vld [vmem:[%s1 + $0x8] sm:$0xff]
        %v817 = vld [vmem:[%s1 + $0x10] sm:$0xff]
        %v818 = vld [vmem:[%s1 + $0x18] sm:$0xff]
        %823 = vset.pattern.permute.xlu0 0
        %824 = vperm.xlu0 %823, %v811
        %v825 = vpop.permute.xlu0 %824
        %826 = vset.pattern.permute.xlu0 0
        %827 = vperm.xlu0 %826, %v812
        %v828 = vpop.permute.xlu0 %827
        %829 = vset.pattern.permute.xlu0 0
        %830 = vperm.xlu0 %829, %v813
        %v831 = vpop.permute.xlu0 %830
        %832 = vset.pattern.permute.xlu0 0
        %833 = vperm.xlu0 %832, %v814
        %v834 = vpop.permute.xlu0 %833
        %v835 = vlaneseq
        %v836 = vand.u32 %v835, 127
        %v837 = vlaneseq
        %v838 = vshrl.u32 %v837, 7
        %v839 = vsub.s32 %v836, %v838
        %v840 = vrot.slane %v825, %v839
        %v841 = vadd.s32 %v836, 4294967288
        %v842 = vlaneseq
        %v843 = vshrl.u32 %v842, 7
        %v844 = vsub.s32 %v841, %v843
        %v845 = vrot.slane %v828, %v844
        %vm846 = vcmask 130112
        %v847 = vsel %vm846, %v845, %v840
        %v848 = vadd.s32 %v836, 4294967280
        %v849 = vlaneseq
        %v850 = vshrl.u32 %v849, 7
        %v851 = vsub.s32 %v848, %v850
        %v852 = vrot.slane %v831, %v851
        %vm853 = vcmask 195712
        %v854 = vsel %vm853, %v852, %v847
        %v855 = vadd.s32 %v836, 4294967272
        %v856 = vlaneseq
        %v857 = vshrl.u32 %v856, 7
        %v858 = vsub.s32 %v855, %v857
        %v859 = vrot.slane %v834, %v858
        %vm860 = vcmask 261312
        %v861 = vsel %vm860, %v859, %v854
        %vm862 = vcmask 261120
        %v863 = vsel %vm862, %v861, 0
        %865 = vmatprep.subr.mxu0 0.0
        %v866 = vand.u32 %v815, 4294901760
        %867 = vmatpush1.msra.mxu0 %v866
        %868 = vmatprep.subr.mxu0 0.0
        %v869 = vand.u32 %v816, 4294901760
        %870 = vmatpush1.msra.mxu0 %v869
        %871 = vmatprep.subr.mxu0 0.0
        %v872 = vand.u32 %v817, 4294901760
        %873 = vmatpush1.msra.mxu0 %v872
        %874 = vmatprep.subr.mxu0 0.0
        %v875 = vand.u32 %v818, 4294901760
        %876 = vmatpush1.msra.mxu0 %v875
        %877 = vmatprep.subr.mxu0 0.0
        %878 = vmatpush1.msra.mxu0 0.0
        %879 = vmatprep.subr.mxu0 0.0
        %880 = vmatpush1.msra.mxu0 0.0
        %881 = vmatprep.subr.mxu0 0.0
        %882 = vmatpush1.msra.mxu0 0.0
        %883 = vmatprep.subr.mxu0 0.0
        %884 = vmatpush1.msra.mxu0 0.0
        %885 = vmatprep.subr.mxu0 0.0
        %886 = vmatpush1.msra.mxu0 0.0
        %887 = vmatprep.subr.mxu0 0.0
        %888 = vmatpush1.msra.mxu0 0.0
        %889 = vmatprep.subr.mxu0 0.0
        %890 = vmatpush1.msra.mxu0 0.0
        %891 = vmatprep.subr.mxu0 0.0
        %892 = vmatpush1.msra.mxu0 0.0
        %893 = vmatprep.subr.mxu0 0.0
        %894 = vmatpush1.msra.mxu0 0.0
        %895 = vmatprep.subr.mxu0 0.0
        %896 = vmatpush1.msra.mxu0 0.0
        %897 = vmatprep.subr.mxu0 0.0
        %898 = vmatpush1.msra.mxu0 0.0
        %899 = vmatprep.subr.mxu0 0.0
        %900 = vmatpush1.msra.mxu0 0.0
        %901 = vmatprep.subr.mxu0 0.0
        %902 = vmatpush1.msra.mxu0 0.0
        %903 = vmatprep.subr.mxu0 0.0
        %904 = vmatpush1.msra.mxu0 0.0
        %905 = vmatprep.subr.mxu0 0.0
        %906 = vmatpush1.msra.mxu0 0.0
        %907 = vmatprep.subr.mxu0 0.0
        %908 = vmatpush1.msra.mxu0 0.0
        %909 = vmatprep.subr.mxu0 0.0
        %910 = vmatpush1.msra.mxu0 0.0
        %911 = vmatprep.subr.mxu0 0.0
        %912 = vmatpush1.msra.mxu0 0.0
        %913 = vmatprep.subr.mxu0 0.0
        %914 = vmatpush1.msra.mxu0 0.0
        %915 = vmatprep.subr.mxu0 0.0
        %916 = vmatpush1.msra.mxu0 0.0
        %917 = vmatprep.subr.mxu0 0.0
        %918 = vmatpush1.msra.mxu0 0.0
        %919 = vmatprep.subr.mxu0 0.0
        %920 = vmatpush1.msra.mxu0 0.0
        %921 = vmatprep.subr.mxu0 0.0
        %922 = vmatpush1.msra.mxu0 0.0
        %923 = vmatprep.subr.mxu0 0.0
        %924 = vmatpush1.msra.mxu0 0.0
        %925 = vmatprep.subr.mxu0 0.0
        %926 = vmatpush1.msra.mxu0 0.0
        %927 = vmatprep.subr.mxu0 0.0
        %928 = vmatpush1.msra.mxu0 0.0
        %929 = vmatprep.subr.mxu0 0.0
        %930 = vmatpush1.msra.mxu0 0.0
        %931 = vmatprep.subr.mxu0 0.0
        %932 = vmatpush1.msra.mxu0 0.0
        %933 = vmatprep.mubr.f32.mxu0 0.0
        %v934 = vand.u32 %v863, 4294901760
        %v935 = vsub.f32 %v863, %v934
        %v936 = vand.u32 %v935, 4294901760
        %v937 = vsub.f32 %v935, %v936
        %v938 = vand.u32 %v937, 4294901760
        %939 = vmatmul.mubr.f32.gmra.mrb[0].mxu0 %v938
        %v940 = vpop.f32.mrb[0].mxu0
        %v941 = vadd.f32 0.0, %v940
        %v942 = vpop.f32.mrb[0].mxu0
        %943 = vdwg.mxu0
        %944 = vmatprep.subr.mxu0 0.0
        %v945 = vand.u32 %v815, 4294901760
        %v946 = vsub.f32 %v815, %v945
        %v947 = vand.u32 %v946, 4294901760
        %v948 = vsub.f32 %v946, %v947
        %v949 = vand.u32 %v948, 4294901760
        %950 = vmatpush1.msra.mxu0 %v949
        %951 = vmatprep.subr.mxu0 0.0
        %v952 = vand.u32 %v816, 4294901760
        %v953 = vsub.f32 %v816, %v952
        %v954 = vand.u32 %v953, 4294901760
        %v955 = vsub.f32 %v953, %v954
        %v956 = vand.u32 %v955, 4294901760
        %957 = vmatpush1.msra.mxu0 %v956
        %958 = vmatprep.subr.mxu0 0.0
        %v959 = vand.u32 %v817, 4294901760
        %v960 = vsub.f32 %v817, %v959
        %v961 = vand.u32 %v960, 4294901760
        %v962 = vsub.f32 %v960, %v961
        %v963 = vand.u32 %v962, 4294901760
        %964 = vmatpush1.msra.mxu0 %v963
        %965 = vmatprep.subr.mxu0 0.0
        %v966 = vand.u32 %v818, 4294901760
        %v967 = vsub.f32 %v818, %v966
        %v968 = vand.u32 %v967, 4294901760
        %v969 = vsub.f32 %v967, %v968
        %v970 = vand.u32 %v969, 4294901760
        %971 = vmatpush1.msra.mxu0 %v970
        %972 = vmatprep.subr.mxu0 0.0
        %973 = vmatpush1.msra.mxu0 0.0
        %974 = vmatprep.subr.mxu0 0.0
        %975 = vmatpush1.msra.mxu0 0.0
        %976 = vmatprep.subr.mxu0 0.0
        %977 = vmatpush1.msra.mxu0 0.0
        %978 = vmatprep.subr.mxu0 0.0
        %979 = vmatpush1.msra.mxu0 0.0
        %980 = vmatprep.subr.mxu0 0.0
        %981 = vmatpush1.msra.mxu0 0.0
        %982 = vmatprep.subr.mxu0 0.0
        %983 = vmatpush1.msra.mxu0 0.0
        %984 = vmatprep.subr.mxu0 0.0
        %985 = vmatpush1.msra.mxu0 0.0
        %986 = vmatprep.subr.mxu0 0.0
        %987 = vmatpush1.msra.mxu0 0.0
        %988 = vmatprep.subr.mxu0 0.0
        %989 = vmatpush1.msra.mxu0 0.0
        %990 = vmatprep.subr.mxu0 0.0
        %991 = vmatpush1.msra.mxu0 0.0
        %992 = vmatprep.subr.mxu0 0.0
        %993 = vmatpush1.msra.mxu0 0.0
        %994 = vmatprep.subr.mxu0 0.0
        %995 = vmatpush1.msra.mxu0 0.0
        %996 = vmatprep.subr.mxu0 0.0
        %997 = vmatpush1.msra.mxu0 0.0
        %998 = vmatprep.subr.mxu0 0.0
        %999 = vmatpush1.msra.mxu0 0.0
        %1000 = vmatprep.subr.mxu0 0.0
        %1001 = vmatpush1.msra.mxu0 0.0
        %1002 = vmatprep.subr.mxu0 0.0
        %1003 = vmatpush1.msra.mxu0 0.0
        %1004 = vmatprep.subr.mxu0 0.0
        %1005 = vmatpush1.msra.mxu0 0.0
        %1006 = vmatprep.subr.mxu0 0.0
        %1007 = vmatpush1.msra.mxu0 0.0
        %1008 = vmatprep.subr.mxu0 0.0
        %1009 = vmatpush1.msra.mxu0 0.0
        %1010 = vmatprep.subr.mxu0 0.0
        %1011 = vmatpush1.msra.mxu0 0.0
        %1012 = vmatprep.subr.mxu0 0.0
        %1013 = vmatpush1.msra.mxu0 0.0
        %1014 = vmatprep.subr.mxu0 0.0
        %1015 = vmatpush1.msra.mxu0 0.0
        %1016 = vmatprep.subr.mxu0 0.0
        %1017 = vmatpush1.msra.mxu0 0.0
        %1018 = vmatprep.subr.mxu0 0.0
        %1019 = vmatpush1.msra.mxu0 0.0
        %1020 = vmatprep.subr.mxu0 0.0
        %1021 = vmatpush1.msra.mxu0 0.0
        %1022 = vmatprep.subr.mxu0 0.0
        %1023 = vmatpush1.msra.mxu0 0.0
        %1024 = vmatprep.subr.mxu0 0.0
        %1025 = vmatpush1.msra.mxu0 0.0
        %1026 = vmatprep.subr.mxu0 0.0
        %1027 = vmatpush1.msra.mxu0 0.0
        %1028 = vmatprep.mubr.f32.mxu0 0.0
        %v1029 = vand.u32 %v863, 4294901760
        %1030 = vmatmul.mubr.f32.gmra.mrb[0].mxu0 %v1029
        %v1031 = vpop.f32.mrb[0].mxu0
        %v1032 = vadd.f32 %v941, %v1031
        %v1033 = vpop.f32.mrb[0].mxu0
        %1034 = vdwg.mxu0
        %1035 = vmatprep.subr.mxu0 0.0
        %v1036 = vand.u32 %v815, 4294901760
        %v1037 = vsub.f32 %v815, %v1036
        %1038 = vmatpush1.msra.mxu0 %v1037
        %1039 = vmatprep.subr.mxu0 0.0
        %v1040 = vand.u32 %v816, 4294901760
        %v1041 = vsub.f32 %v816, %v1040
        %1042 = vmatpush1.msra.mxu0 %v1041
        %1043 = vmatprep.subr.mxu0 0.0
        %v1044 = vand.u32 %v817, 4294901760
        %v1045 = vsub.f32 %v817, %v1044
        %1046 = vmatpush1.msra.mxu0 %v1045
        %1047 = vmatprep.subr.mxu0 0.0
        %v1048 = vand.u32 %v818, 4294901760
        %v1049 = vsub.f32 %v818, %v1048
        %1050 = vmatpush1.msra.mxu0 %v1049
        %1051 = vmatprep.subr.mxu0 0.0
        %1052 = vmatpush1.msra.mxu0 0.0
        %1053 = vmatprep.subr.mxu0 0.0
        %1054 = vmatpush1.msra.mxu0 0.0
        %1055 = vmatprep.subr.mxu0 0.0
        %1056 = vmatpush1.msra.mxu0 0.0
        %1057 = vmatprep.subr.mxu0 0.0
        %1058 = vmatpush1.msra.mxu0 0.0
        %1059 = vmatprep.subr.mxu0 0.0
        %1060 = vmatpush1.msra.mxu0 0.0
        %1061 = vmatprep.subr.mxu0 0.0
        %1062 = vmatpush1.msra.mxu0 0.0
        %1063 = vmatprep.subr.mxu0 0.0
        %1064 = vmatpush1.msra.mxu0 0.0
        %1065 = vmatprep.subr.mxu0 0.0
        %1066 = vmatpush1.msra.mxu0 0.0
        %1067 = vmatprep.subr.mxu0 0.0
        %1068 = vmatpush1.msra.mxu0 0.0
        %1069 = vmatprep.subr.mxu0 0.0
        %1070 = vmatpush1.msra.mxu0 0.0
        %1071 = vmatprep.subr.mxu0 0.0
        %1072 = vmatpush1.msra.mxu0 0.0
        %1073 = vmatprep.subr.mxu0 0.0
        %1074 = vmatpush1.msra.mxu0 0.0
        %1075 = vmatprep.subr.mxu0 0.0
        %1076 = vmatpush1.msra.mxu0 0.0
        %1077 = vmatprep.subr.mxu0 0.0
        %1078 = vmatpush1.msra.mxu0 0.0
        %1079 = vmatprep.subr.mxu0 0.0
        %1080 = vmatpush1.msra.mxu0 0.0
        %1081 = vmatprep.subr.mxu0 0.0
        %1082 = vmatpush1.msra.mxu0 0.0
        %1083 = vmatprep.subr.mxu0 0.0
        %1084 = vmatpush1.msra.mxu0 0.0
        %1085 = vmatprep.subr.mxu0 0.0
        %1086 = vmatpush1.msra.mxu0 0.0
        %1087 = vmatprep.subr.mxu0 0.0
        %1088 = vmatpush1.msra.mxu0 0.0
        %1089 = vmatprep.subr.mxu0 0.0
        %1090 = vmatpush1.msra.mxu0 0.0
        %1091 = vmatprep.subr.mxu0 0.0
        %1092 = vmatpush1.msra.mxu0 0.0
        %1093 = vmatprep.subr.mxu0 0.0
        %1094 = vmatpush1.msra.mxu0 0.0
        %1095 = vmatprep.subr.mxu0 0.0
        %1096 = vmatpush1.msra.mxu0 0.0
        %1097 = vmatprep.subr.mxu0 0.0
        %1098 = vmatpush1.msra.mxu0 0.0
        %1099 = vmatprep.subr.mxu0 0.0
        %1100 = vmatpush1.msra.mxu0 0.0
        %1101 = vmatprep.subr.mxu0 0.0
        %1102 = vmatpush1.msra.mxu0 0.0
        %1103 = vmatprep.subr.mxu0 0.0
        %1104 = vmatpush1.msra.mxu0 0.0
        %1105 = vmatprep.subr.mxu0 0.0
        %1106 = vmatpush1.msra.mxu0 0.0
        %1107 = vmatprep.mubr.f32.mxu0 0.0
        %v1108 = vand.u32 %v863, 4294901760
        %v1109 = vsub.f32 %v863, %v1108
        %1110 = vmatmul.mubr.f32.gmra.mrb[0].mxu0 %v1109
        %v1111 = vpop.f32.mrb[0].mxu0
        %v1112 = vadd.f32 %v1032, %v1111
        %v1113 = vpop.f32.mrb[0].mxu0
        %1114 = vdwg.mxu0
        %1115 = vmatprep.subr.mxu0 0.0
        %v1116 = vand.u32 %v815, 4294901760
        %1117 = vmatpush1.msra.mxu0 %v1116
        %1118 = vmatprep.subr.mxu0 0.0
        %v1119 = vand.u32 %v816, 4294901760
        %1120 = vmatpush1.msra.mxu0 %v1119
        %1121 = vmatprep.subr.mxu0 0.0
        %v1122 = vand.u32 %v817, 4294901760
        %1123 = vmatpush1.msra.mxu0 %v1122
        %1124 = vmatprep.subr.mxu0 0.0
        %v1125 = vand.u32 %v818, 4294901760
        %1126 = vmatpush1.msra.mxu0 %v1125
        %1127 = vmatprep.subr.mxu0 0.0
        %1128 = vmatpush1.msra.mxu0 0.0
        %1129 = vmatprep.subr.mxu0 0.0
        %1130 = vmatpush1.msra.mxu0 0.0
        %1131 = vmatprep.subr.mxu0 0.0
        %1132 = vmatpush1.msra.mxu0 0.0
        %1133 = vmatprep.subr.mxu0 0.0
        %1134 = vmatpush1.msra.mxu0 0.0
        %1135 = vmatprep.subr.mxu0 0.0
        %1136 = vmatpush1.msra.mxu0 0.0
        %1137 = vmatprep.subr.mxu0 0.0
        %1138 = vmatpush1.msra.mxu0 0.0
        %1139 = vmatprep.subr.mxu0 0.0
        %1140 = vmatpush1.msra.mxu0 0.0
        %1141 = vmatprep.subr.mxu0 0.0
        %1142 = vmatpush1.msra.mxu0 0.0
        %1143 = vmatprep.subr.mxu0 0.0
        %1144 = vmatpush1.msra.mxu0 0.0
        %1145 = vmatprep.subr.mxu0 0.0
        %1146 = vmatpush1.msra.mxu0 0.0
        %1147 = vmatprep.subr.mxu0 0.0
        %1148 = vmatpush1.msra.mxu0 0.0
        %1149 = vmatprep.subr.mxu0 0.0
        %1150 = vmatpush1.msra.mxu0 0.0
        %1151 = vmatprep.subr.mxu0 0.0
        %1152 = vmatpush1.msra.mxu0 0.0
        %1153 = vmatprep.subr.mxu0 0.0
        %1154 = vmatpush1.msra.mxu0 0.0
        %1155 = vmatprep.subr.mxu0 0.0
        %1156 = vmatpush1.msra.mxu0 0.0
        %1157 = vmatprep.subr.mxu0 0.0
        %1158 = vmatpush1.msra.mxu0 0.0
        %1159 = vmatprep.subr.mxu0 0.0
        %1160 = vmatpush1.msra.mxu0 0.0
        %1161 = vmatprep.subr.mxu0 0.0
        %1162 = vmatpush1.msra.mxu0 0.0
        %1163 = vmatprep.subr.mxu0 0.0
        %1164 = vmatpush1.msra.mxu0 0.0
        %1165 = vmatprep.subr.mxu0 0.0
        %1166 = vmatpush1.msra.mxu0 0.0
        %1167 = vmatprep.subr.mxu0 0.0
        %1168 = vmatpush1.msra.mxu0 0.0
        %1169 = vmatprep.subr.mxu0 0.0
        %1170 = vmatpush1.msra.mxu0 0.0
        %1171 = vmatprep.subr.mxu0 0.0
        %1172 = vmatpush1.msra.mxu0 0.0
        %1173 = vmatprep.subr.mxu0 0.0
        %1174 = vmatpush1.msra.mxu0 0.0
        %1175 = vmatprep.subr.mxu0 0.0
        %1176 = vmatpush1.msra.mxu0 0.0
        %1177 = vmatprep.subr.mxu0 0.0
        %1178 = vmatpush1.msra.mxu0 0.0
        %1179 = vmatprep.subr.mxu0 0.0
        %1180 = vmatpush1.msra.mxu0 0.0
        %1181 = vmatprep.subr.mxu0 0.0
        %1182 = vmatpush1.msra.mxu0 0.0
        %1183 = vmatprep.mubr.f32.mxu0 0.0
        %v1184 = vand.u32 %v863, 4294901760
        %v1185 = vsub.f32 %v863, %v1184
        %v1186 = vand.u32 %v1185, 4294901760
        %1187 = vmatmul.mubr.f32.gmra.mrb[0].mxu0 %v1186
        %v1188 = vpop.f32.mrb[0].mxu0
        %v1189 = vadd.f32 %v1112, %v1188
        %v1190 = vpop.f32.mrb[0].mxu0
        %1191 = vdwg.mxu0
        %1192 = vmatprep.subr.mxu0 0.0
        %v1193 = vand.u32 %v815, 4294901760
        %v1194 = vsub.f32 %v815, %v1193
        %v1195 = vand.u32 %v1194, 4294901760
        %1196 = vmatpush1.msra.mxu0 %v1195
        %1197 = vmatprep.subr.mxu0 0.0
        %v1198 = vand.u32 %v816, 4294901760
        %v1199 = vsub.f32 %v816, %v1198
        %v1200 = vand.u32 %v1199, 4294901760
        %1201 = vmatpush1.msra.mxu0 %v1200
        %1202 = vmatprep.subr.mxu0 0.0
        %v1203 = vand.u32 %v817, 4294901760
        %v1204 = vsub.f32 %v817, %v1203
        %v1205 = vand.u32 %v1204, 4294901760
        %1206 = vmatpush1.msra.mxu0 %v1205
        %1207 = vmatprep.subr.mxu0 0.0
        %v1208 = vand.u32 %v818, 4294901760
        %v1209 = vsub.f32 %v818, %v1208
        %v1210 = vand.u32 %v1209, 4294901760
        %1211 = vmatpush1.msra.mxu0 %v1210
        %1212 = vmatprep.subr.mxu0 0.0
        %1213 = vmatpush1.msra.mxu0 0.0
        %1214 = vmatprep.subr.mxu0 0.0
        %1215 = vmatpush1.msra.mxu0 0.0
        %1216 = vmatprep.subr.mxu0 0.0
        %1217 = vmatpush1.msra.mxu0 0.0
        %1218 = vmatprep.subr.mxu0 0.0
        %1219 = vmatpush1.msra.mxu0 0.0
        %1220 = vmatprep.subr.mxu0 0.0
        %1221 = vmatpush1.msra.mxu0 0.0
        %1222 = vmatprep.subr.mxu0 0.0
        %1223 = vmatpush1.msra.mxu0 0.0
        %1224 = vmatprep.subr.mxu0 0.0
        %1225 = vmatpush1.msra.mxu0 0.0
        %1226 = vmatprep.subr.mxu0 0.0
        %1227 = vmatpush1.msra.mxu0 0.0
        %1228 = vmatprep.subr.mxu0 0.0
        %1229 = vmatpush1.msra.mxu0 0.0
        %1230 = vmatprep.subr.mxu0 0.0
        %1231 = vmatpush1.msra.mxu0 0.0
        %1232 = vmatprep.subr.mxu0 0.0
        %1233 = vmatpush1.msra.mxu0 0.0
        %1234 = vmatprep.subr.mxu0 0.0
        %1235 = vmatpush1.msra.mxu0 0.0
        %1236 = vmatprep.subr.mxu0 0.0
        %1237 = vmatpush1.msra.mxu0 0.0
        %1238 = vmatprep.subr.mxu0 0.0
        %1239 = vmatpush1.msra.mxu0 0.0
        %1240 = vmatprep.subr.mxu0 0.0
        %1241 = vmatpush1.msra.mxu0 0.0
        %1242 = vmatprep.subr.mxu0 0.0
        %1243 = vmatpush1.msra.mxu0 0.0
        %1244 = vmatprep.subr.mxu0 0.0
        %1245 = vmatpush1.msra.mxu0 0.0
        %1246 = vmatprep.subr.mxu0 0.0
        %1247 = vmatpush1.msra.mxu0 0.0
        %1248 = vmatprep.subr.mxu0 0.0
        %1249 = vmatpush1.msra.mxu0 0.0
        %1250 = vmatprep.subr.mxu0 0.0
        %1251 = vmatpush1.msra.mxu0 0.0
        %1252 = vmatprep.subr.mxu0 0.0
        %1253 = vmatpush1.msra.mxu0 0.0
        %1254 = vmatprep.subr.mxu0 0.0
        %1255 = vmatpush1.msra.mxu0 0.0
        %1256 = vmatprep.subr.mxu0 0.0
        %1257 = vmatpush1.msra.mxu0 0.0
        %1258 = vmatprep.subr.mxu0 0.0
        %1259 = vmatpush1.msra.mxu0 0.0
        %1260 = vmatprep.subr.mxu0 0.0
        %1261 = vmatpush1.msra.mxu0 0.0
        %1262 = vmatprep.subr.mxu0 0.0
        %1263 = vmatpush1.msra.mxu0 0.0
        %1264 = vmatprep.subr.mxu0 0.0
        %1265 = vmatpush1.msra.mxu0 0.0
        %1266 = vmatprep.subr.mxu0 0.0
        %1267 = vmatpush1.msra.mxu0 0.0
        %1268 = vmatprep.mubr.f32.mxu0 0.0
        %v1269 = vand.u32 %v863, 4294901760
        %1270 = vmatmul.mubr.f32.gmra.mrb[0].mxu0 %v1269
        %v1271 = vpop.f32.mrb[0].mxu0
        %v1272 = vadd.f32 %v1189, %v1271
        %v1273 = vpop.f32.mrb[0].mxu0
        %1274 = vdwg.mxu0
        %1275 = vmatprep.subr.mxu0 0.0
        %v1276 = vand.u32 %v815, 4294901760
        %1277 = vmatpush1.msra.mxu0 %v1276
        %1278 = vmatprep.subr.mxu0 0.0
        %v1279 = vand.u32 %v816, 4294901760
        %1280 = vmatpush1.msra.mxu0 %v1279
        %1281 = vmatprep.subr.mxu0 0.0
        %v1282 = vand.u32 %v817, 4294901760
        %1283 = vmatpush1.msra.mxu0 %v1282
        %1284 = vmatprep.subr.mxu0 0.0
        %v1285 = vand.u32 %v818, 4294901760
        %1286 = vmatpush1.msra.mxu0 %v1285
        %1287 = vmatprep.subr.mxu0 0.0
        %1288 = vmatpush1.msra.mxu0 0.0
        %1289 = vmatprep.subr.mxu0 0.0
        %1290 = vmatpush1.msra.mxu0 0.0
        %1291 = vmatprep.subr.mxu0 0.0
        %1292 = vmatpush1.msra.mxu0 0.0
        %1293 = vmatprep.subr.mxu0 0.0
        %1294 = vmatpush1.msra.mxu0 0.0
        %1295 = vmatprep.subr.mxu0 0.0
        %1296 = vmatpush1.msra.mxu0 0.0
        %1297 = vmatprep.subr.mxu0 0.0
        %1298 = vmatpush1.msra.mxu0 0.0
        %1299 = vmatprep.subr.mxu0 0.0
        %1300 = vmatpush1.msra.mxu0 0.0
        %1301 = vmatprep.subr.mxu0 0.0
        %1302 = vmatpush1.msra.mxu0 0.0
        %1303 = vmatprep.subr.mxu0 0.0
        %1304 = vmatpush1.msra.mxu0 0.0
        %1305 = vmatprep.subr.mxu0 0.0
        %1306 = vmatpush1.msra.mxu0 0.0
        %1307 = vmatprep.subr.mxu0 0.0
        %1308 = vmatpush1.msra.mxu0 0.0
        %1309 = vmatprep.subr.mxu0 0.0
        %1310 = vmatpush1.msra.mxu0 0.0
        %1311 = vmatprep.subr.mxu0 0.0
        %1312 = vmatpush1.msra.mxu0 0.0
        %1313 = vmatprep.subr.mxu0 0.0
        %1314 = vmatpush1.msra.mxu0 0.0
        %1315 = vmatprep.subr.mxu0 0.0
        %1316 = vmatpush1.msra.mxu0 0.0
        %1317 = vmatprep.subr.mxu0 0.0
        %1318 = vmatpush1.msra.mxu0 0.0
        %1319 = vmatprep.subr.mxu0 0.0
        %1320 = vmatpush1.msra.mxu0 0.0
        %1321 = vmatprep.subr.mxu0 0.0
        %1322 = vmatpush1.msra.mxu0 0.0
        %1323 = vmatprep.subr.mxu0 0.0
        %1324 = vmatpush1.msra.mxu0 0.0
        %1325 = vmatprep.subr.mxu0 0.0
        %1326 = vmatpush1.msra.mxu0 0.0
        %1327 = vmatprep.subr.mxu0 0.0
        %1328 = vmatpush1.msra.mxu0 0.0
        %1329 = vmatprep.subr.mxu0 0.0
        %1330 = vmatpush1.msra.mxu0 0.0
        %1331 = vmatprep.subr.mxu0 0.0
        %1332 = vmatpush1.msra.mxu0 0.0
        %1333 = vmatprep.subr.mxu0 0.0
        %1334 = vmatpush1.msra.mxu0 0.0
        %1335 = vmatprep.subr.mxu0 0.0
        %1336 = vmatpush1.msra.mxu0 0.0
        %1337 = vmatprep.subr.mxu0 0.0
        %1338 = vmatpush1.msra.mxu0 0.0
        %1339 = vmatprep.subr.mxu0 0.0
        %1340 = vmatpush1.msra.mxu0 0.0
        %1341 = vmatprep.subr.mxu0 0.0
        %1342 = vmatpush1.msra.mxu0 0.0
        %1343 = vmatprep.mubr.f32.mxu0 0.0
        %v1344 = vand.u32 %v863, 4294901760
        %1345 = vmatmul.mubr.f32.gmra.mrb[0].mxu0 %v1344
        %v1346 = vpop.f32.mrb[0].mxu0
        %v1347 = vadd.f32 %v1272, %v1346
        %v1348 = vpop.f32.mrb[0].mxu0
        %1349 = vdwg.mxu0
        %v1350 = vmax.f32 %v1347, 0.0
        %v1351 = vld [vmem:[%s2] sm:$0x3]
        %vm1352 = vcmask 15360
        %v1354 = vsel %vm1352, %v1350, 0
        %vm1356 = vcmask 1041408
        %v1358 = vsel %vm1356, %v1351, 0
        %1360 = vmatprep.subr.mxu0 0.0
        %v1361 = vand.u32 %v1358, 4294901760
        %1362 = vmatpush1.msra.mxu0 %v1361
        %1363 = vmatprep.subr.mxu0 0.0
        %1364 = vmatpush1.msra.mxu0 0.0
        %1365 = vmatprep.subr.mxu0 0.0
        %1366 = vmatpush1.msra.mxu0 0.0
        %1367 = vmatprep.subr.mxu0 0.0
        %1368 = vmatpush1.msra.mxu0 0.0
        %1369 = vmatprep.subr.mxu0 0.0
        %1370 = vmatpush1.msra.mxu0 0.0
        %1371 = vmatprep.subr.mxu0 0.0
        %1372 = vmatpush1.msra.mxu0 0.0
        %1373 = vmatprep.subr.mxu0 0.0
        %1374 = vmatpush1.msra.mxu0 0.0
        %1375 = vmatprep.subr.mxu0 0.0
        %1376 = vmatpush1.msra.mxu0 0.0
        %1377 = vmatprep.subr.mxu0 0.0
        %1378 = vmatpush1.msra.mxu0 0.0
        %1379 = vmatprep.subr.mxu0 0.0
        %1380 = vmatpush1.msra.mxu0 0.0
        %1381 = vmatprep.subr.mxu0 0.0
        %1382 = vmatpush1.msra.mxu0 0.0
        %1383 = vmatprep.subr.mxu0 0.0
        %1384 = vmatpush1.msra.mxu0 0.0
        %1385 = vmatprep.subr.mxu0 0.0
        %1386 = vmatpush1.msra.mxu0 0.0
        %1387 = vmatprep.subr.mxu0 0.0
        %1388 = vmatpush1.msra.mxu0 0.0
        %1389 = vmatprep.subr.mxu0 0.0
        %1390 = vmatpush1.msra.mxu0 0.0
        %1391 = vmatprep.subr.mxu0 0.0
        %1392 = vmatpush1.msra.mxu0 0.0
        %1393 = vmatprep.subr.mxu0 0.0
        %1394 = vmatpush1.msra.mxu0 0.0
        %1395 = vmatprep.subr.mxu0 0.0
        %1396 = vmatpush1.msra.mxu0 0.0
        %1397 = vmatprep.subr.mxu0 0.0
        %1398 = vmatpush1.msra.mxu0 0.0
        %1399 = vmatprep.subr.mxu0 0.0
        %1400 = vmatpush1.msra.mxu0 0.0
        %1401 = vmatprep.subr.mxu0 0.0
        %1402 = vmatpush1.msra.mxu0 0.0
        %1403 = vmatprep.subr.mxu0 0.0
        %1404 = vmatpush1.msra.mxu0 0.0
        %1405 = vmatprep.subr.mxu0 0.0
        %1406 = vmatpush1.msra.mxu0 0.0
        %1407 = vmatprep.subr.mxu0 0.0
        %1408 = vmatpush1.msra.mxu0 0.0
        %1409 = vmatprep.subr.mxu0 0.0
        %1410 = vmatpush1.msra.mxu0 0.0
        %1411 = vmatprep.subr.mxu0 0.0
        %1412 = vmatpush1.msra.mxu0 0.0
        %1413 = vmatprep.subr.mxu0 0.0
        %1414 = vmatpush1.msra.mxu0 0.0
        %1415 = vmatprep.subr.mxu0 0.0
        %1416 = vmatpush1.msra.mxu0 0.0
        %1417 = vmatprep.subr.mxu0 0.0
        %1418 = vmatpush1.msra.mxu0 0.0
        %1419 = vmatprep.subr.mxu0 0.0
        %1420 = vmatpush1.msra.mxu0 0.0
        %1421 = vmatprep.subr.mxu0 0.0
        %1422 = vmatpush1.msra.mxu0 0.0
        %1423 = vmatprep.subr.mxu0 0.0
        %1424 = vmatpush1.msra.mxu0 0.0
        %1425 = vmatprep.mubr.f32.mxu0 0.0
        %v1426 = vand.u32 %v1354, 4294901760
        %v1427 = vsub.f32 %v1354, %v1426
        %v1428 = vand.u32 %v1427, 4294901760
        %v1429 = vsub.f32 %v1427, %v1428
        %v1430 = vand.u32 %v1429, 4294901760
        %1431 = vmatmul.mubr.f32.gmra.mrb[0].mxu0 %v1430
        %v1432 = vpop.f32.mrb[0].mxu0
        %v1433 = vadd.f32 0.0, %v1432
        %v1434 = vpop.f32.mrb[0].mxu0
        %1435 = vdwg.mxu0
        %1436 = vmatprep.subr.mxu0 0.0
        %v1437 = vand.u32 %v1358, 4294901760
        %v1438 = vsub.f32 %v1358, %v1437
        %v1439 = vand.u32 %v1438, 4294901760
        %v1440 = vsub.f32 %v1438, %v1439
        %v1441 = vand.u32 %v1440, 4294901760
        %1442 = vmatpush1.msra.mxu0 %v1441
        %1443 = vmatprep.subr.mxu0 0.0
        %1444 = vmatpush1.msra.mxu0 0.0
        %1445 = vmatprep.subr.mxu0 0.0
        %1446 = vmatpush1.msra.mxu0 0.0
        %1447 = vmatprep.subr.mxu0 0.0
        %1448 = vmatpush1.msra.mxu0 0.0
        %1449 = vmatprep.subr.mxu0 0.0
        %1450 = vmatpush1.msra.mxu0 0.0
        %1451 = vmatprep.subr.mxu0 0.0
        %1452 = vmatpush1.msra.mxu0 0.0
        %1453 = vmatprep.subr.mxu0 0.0
        %1454 = vmatpush1.msra.mxu0 0.0
        %1455 = vmatprep.subr.mxu0 0.0
        %1456 = vmatpush1.msra.mxu0 0.0
        %1457 = vmatprep.subr.mxu0 0.0
        %1458 = vmatpush1.msra.mxu0 0.0
        %1459 = vmatprep.subr.mxu0 0.0
        %1460 = vmatpush1.msra.mxu0 0.0
        %1461 = vmatprep.subr.mxu0 0.0
        %1462 = vmatpush1.msra.mxu0 0.0
        %1463 = vmatprep.subr.mxu0 0.0
        %1464 = vmatpush1.msra.mxu0 0.0
        %1465 = vmatprep.subr.mxu0 0.0
        %1466 = vmatpush1.msra.mxu0 0.0
        %1467 = vmatprep.subr.mxu0 0.0
        %1468 = vmatpush1.msra.mxu0 0.0
        %1469 = vmatprep.subr.mxu0 0.0
        %1470 = vmatpush1.msra.mxu0 0.0
        %1471 = vmatprep.subr.mxu0 0.0
        %1472 = vmatpush1.msra.mxu0 0.0
        %1473 = vmatprep.subr.mxu0 0.0
        %1474 = vmatpush1.msra.mxu0 0.0
        %1475 = vmatprep.subr.mxu0 0.0
        %1476 = vmatpush1.msra.mxu0 0.0
        %1477 = vmatprep.subr.mxu0 0.0
        %1478 = vmatpush1.msra.mxu0 0.0
        %1479 = vmatprep.subr.mxu0 0.0
        %1480 = vmatpush1.msra.mxu0 0.0
        %1481 = vmatprep.subr.mxu0 0.0
        %1482 = vmatpush1.msra.mxu0 0.0
        %1483 = vmatprep.subr.mxu0 0.0
        %1484 = vmatpush1.msra.mxu0 0.0
        %1485 = vmatprep.subr.mxu0 0.0
        %1486 = vmatpush1.msra.mxu0 0.0
        %1487 = vmatprep.subr.mxu0 0.0
        %1488 = vmatpush1.msra.mxu0 0.0
        %1489 = vmatprep.subr.mxu0 0.0
        %1490 = vmatpush1.msra.mxu0 0.0
        %1491 = vmatprep.subr.mxu0 0.0
        %1492 = vmatpush1.msra.mxu0 0.0
        %1493 = vmatprep.subr.mxu0 0.0
        %1494 = vmatpush1.msra.mxu0 0.0
        %1495 = vmatprep.subr.mxu0 0.0
        %1496 = vmatpush1.msra.mxu0 0.0
        %1497 = vmatprep.subr.mxu0 0.0
        %1498 = vmatpush1.msra.mxu0 0.0
        %1499 = vmatprep.subr.mxu0 0.0
        %1500 = vmatpush1.msra.mxu0 0.0
        %1501 = vmatprep.subr.mxu0 0.0
        %1502 = vmatpush1.msra.mxu0 0.0
        %1503 = vmatprep.subr.mxu0 0.0
        %1504 = vmatpush1.msra.mxu0 0.0
        %1505 = vmatprep.mubr.f32.mxu0 0.0
        %v1506 = vand.u32 %v1354, 4294901760
        %1507 = vmatmul.mubr.f32.gmra.mrb[0].mxu0 %v1506
        %v1508 = vpop.f32.mrb[0].mxu0
        %v1509 = vadd.f32 %v1433, %v1508
        %v1510 = vpop.f32.mrb[0].mxu0
        %1511 = vdwg.mxu0
        %1512 = vmatprep.subr.mxu0 0.0
        %v1513 = vand.u32 %v1358, 4294901760
        %v1514 = vsub.f32 %v1358, %v1513
        %1515 = vmatpush1.msra.mxu0 %v1514
        %1516 = vmatprep.subr.mxu0 0.0
        %1517 = vmatpush1.msra.mxu0 0.0
        %1518 = vmatprep.subr.mxu0 0.0
        %1519 = vmatpush1.msra.mxu0 0.0
        %1520 = vmatprep.subr.mxu0 0.0
        %1521 = vmatpush1.msra.mxu0 0.0
        %1522 = vmatprep.subr.mxu0 0.0
        %1523 = vmatpush1.msra.mxu0 0.0
        %1524 = vmatprep.subr.mxu0 0.0
        %1525 = vmatpush1.msra.mxu0 0.0
        %1526 = vmatprep.subr.mxu0 0.0
        %1527 = vmatpush1.msra.mxu0 0.0
        %1528 = vmatprep.subr.mxu0 0.0
        %1529 = vmatpush1.msra.mxu0 0.0
        %1530 = vmatprep.subr.mxu0 0.0
        %1531 = vmatpush1.msra.mxu0 0.0
        %1532 = vmatprep.subr.mxu0 0.0
        %1533 = vmatpush1.msra.mxu0 0.0
        %1534 = vmatprep.subr.mxu0 0.0
        %1535 = vmatpush1.msra.mxu0 0.0
        %1536 = vmatprep.subr.mxu0 0.0
        %1537 = vmatpush1.msra.mxu0 0.0
        %1538 = vmatprep.subr.mxu0 0.0
        %1539 = vmatpush1.msra.mxu0 0.0
        %1540 = vmatprep.subr.mxu0 0.0
        %1541 = vmatpush1.msra.mxu0 0.0
        %1542 = vmatprep.subr.mxu0 0.0
        %1543 = vmatpush1.msra.mxu0 0.0
        %1544 = vmatprep.subr.mxu0 0.0
        %1545 = vmatpush1.msra.mxu0 0.0
        %1546 = vmatprep.subr.mxu0 0.0
        %1547 = vmatpush1.msra.mxu0 0.0
        %1548 = vmatprep.subr.mxu0 0.0
        %1549 = vmatpush1.msra.mxu0 0.0
        %1550 = vmatprep.subr.mxu0 0.0
        %1551 = vmatpush1.msra.mxu0 0.0
        %1552 = vmatprep.subr.mxu0 0.0
        %1553 = vmatpush1.msra.mxu0 0.0
        %1554 = vmatprep.subr.mxu0 0.0
        %1555 = vmatpush1.msra.mxu0 0.0
        %1556 = vmatprep.subr.mxu0 0.0
        %1557 = vmatpush1.msra.mxu0 0.0
        %1558 = vmatprep.subr.mxu0 0.0
        %1559 = vmatpush1.msra.mxu0 0.0
        %1560 = vmatprep.subr.mxu0 0.0
        %1561 = vmatpush1.msra.mxu0 0.0
        %1562 = vmatprep.subr.mxu0 0.0
        %1563 = vmatpush1.msra.mxu0 0.0
        %1564 = vmatprep.subr.mxu0 0.0
        %1565 = vmatpush1.msra.mxu0 0.0
        %1566 = vmatprep.subr.mxu0 0.0
        %1567 = vmatpush1.msra.mxu0 0.0
        %1568 = vmatprep.subr.mxu0 0.0
        %1569 = vmatpush1.msra.mxu0 0.0
        %1570 = vmatprep.subr.mxu0 0.0
        %1571 = vmatpush1.msra.mxu0 0.0
        %1572 = vmatprep.subr.mxu0 0.0
        %1573 = vmatpush1.msra.mxu0 0.0
        %1574 = vmatprep.subr.mxu0 0.0
        %1575 = vmatpush1.msra.mxu0 0.0
        %1576 = vmatprep.subr.mxu0 0.0
        %1577 = vmatpush1.msra.mxu0 0.0
        %1578 = vmatprep.mubr.f32.mxu0 0.0
        %v1579 = vand.u32 %v1354, 4294901760
        %v1580 = vsub.f32 %v1354, %v1579
        %1581 = vmatmul.mubr.f32.gmra.mrb[0].mxu0 %v1580
        %v1582 = vpop.f32.mrb[0].mxu0
        %v1583 = vadd.f32 %v1509, %v1582
        %v1584 = vpop.f32.mrb[0].mxu0
        %1585 = vdwg.mxu0
        %1586 = vmatprep.subr.mxu0 0.0
        %v1587 = vand.u32 %v1358, 4294901760
        %1588 = vmatpush1.msra.mxu0 %v1587
        %1589 = vmatprep.subr.mxu0 0.0
        %1590 = vmatpush1.msra.mxu0 0.0
        %1591 = vmatprep.subr.mxu0 0.0
        %1592 = vmatpush1.msra.mxu0 0.0
        %1593 = vmatprep.subr.mxu0 0.0
        %1594 = vmatpush1.msra.mxu0 0.0
        %1595 = vmatprep.subr.mxu0 0.0
        %1596 = vmatpush1.msra.mxu0 0.0
        %1597 = vmatprep.subr.mxu0 0.0
        %1598 = vmatpush1.msra.mxu0 0.0
        %1599 = vmatprep.subr.mxu0 0.0
        %1600 = vmatpush1.msra.mxu0 0.0
        %1601 = vmatprep.subr.mxu0 0.0
        %1602 = vmatpush1.msra.mxu0 0.0
        %1603 = vmatprep.subr.mxu0 0.0
        %1604 = vmatpush1.msra.mxu0 0.0
        %1605 = vmatprep.subr.mxu0 0.0
        %1606 = vmatpush1.msra.mxu0 0.0
        %1607 = vmatprep.subr.mxu0 0.0
        %1608 = vmatpush1.msra.mxu0 0.0
        %1609 = vmatprep.subr.mxu0 0.0
        %1610 = vmatpush1.msra.mxu0 0.0
        %1611 = vmatprep.subr.mxu0 0.0
        %1612 = vmatpush1.msra.mxu0 0.0
        %1613 = vmatprep.subr.mxu0 0.0
        %1614 = vmatpush1.msra.mxu0 0.0
        %1615 = vmatprep.subr.mxu0 0.0
        %1616 = vmatpush1.msra.mxu0 0.0
        %1617 = vmatprep.subr.mxu0 0.0
        %1618 = vmatpush1.msra.mxu0 0.0
        %1619 = vmatprep.subr.mxu0 0.0
        %1620 = vmatpush1.msra.mxu0 0.0
        %1621 = vmatprep.subr.mxu0 0.0
        %1622 = vmatpush1.msra.mxu0 0.0
        %1623 = vmatprep.subr.mxu0 0.0
        %1624 = vmatpush1.msra.mxu0 0.0
        %1625 = vmatprep.subr.mxu0 0.0
        %1626 = vmatpush1.msra.mxu0 0.0
        %1627 = vmatprep.subr.mxu0 0.0
        %1628 = vmatpush1.msra.mxu0 0.0
        %1629 = vmatprep.subr.mxu0 0.0
        %1630 = vmatpush1.msra.mxu0 0.0
        %1631 = vmatprep.subr.mxu0 0.0
        %1632 = vmatpush1.msra.mxu0 0.0
        %1633 = vmatprep.subr.mxu0 0.0
        %1634 = vmatpush1.msra.mxu0 0.0
        %1635 = vmatprep.subr.mxu0 0.0
        %1636 = vmatpush1.msra.mxu0 0.0
        %1637 = vmatprep.subr.mxu0 0.0
        %1638 = vmatpush1.msra.mxu0 0.0
        %1639 = vmatprep.subr.mxu0 0.0
        %1640 = vmatpush1.msra.mxu0 0.0
        %1641 = vmatprep.subr.mxu0 0.0
        %1642 = vmatpush1.msra.mxu0 0.0
        %1643 = vmatprep.subr.mxu0 0.0
        %1644 = vmatpush1.msra.mxu0 0.0
        %1645 = vmatprep.subr.mxu0 0.0
        %1646 = vmatpush1.msra.mxu0 0.0
        %1647 = vmatprep.subr.mxu0 0.0
        %1648 = vmatpush1.msra.mxu0 0.0
        %1649 = vmatprep.subr.mxu0 0.0
        %1650 = vmatpush1.msra.mxu0 0.0
        %1651 = vmatprep.mubr.f32.mxu0 0.0
        %v1652 = vand.u32 %v1354, 4294901760
        %v1653 = vsub.f32 %v1354, %v1652
        %v1654 = vand.u32 %v1653, 4294901760
        %1655 = vmatmul.mubr.f32.gmra.mrb[0].mxu0 %v1654
        %v1656 = vpop.f32.mrb[0].mxu0
        %v1657 = vadd.f32 %v1583, %v1656
        %v1658 = vpop.f32.mrb[0].mxu0
        %1659 = vdwg.mxu0
        %1660 = vmatprep.subr.mxu0 0.0
        %v1661 = vand.u32 %v1358, 4294901760
        %v1662 = vsub.f32 %v1358, %v1661
        %v1663 = vand.u32 %v1662, 4294901760
        %1664 = vmatpush1.msra.mxu0 %v1663
        %1665 = vmatprep.subr.mxu0 0.0
        %1666 = vmatpush1.msra.mxu0 0.0
        %1667 = vmatprep.subr.mxu0 0.0
        %1668 = vmatpush1.msra.mxu0 0.0
        %1669 = vmatprep.subr.mxu0 0.0
        %1670 = vmatpush1.msra.mxu0 0.0
        %1671 = vmatprep.subr.mxu0 0.0
        %1672 = vmatpush1.msra.mxu0 0.0
        %1673 = vmatprep.subr.mxu0 0.0
        %1674 = vmatpush1.msra.mxu0 0.0
        %1675 = vmatprep.subr.mxu0 0.0
        %1676 = vmatpush1.msra.mxu0 0.0
        %1677 = vmatprep.subr.mxu0 0.0
        %1678 = vmatpush1.msra.mxu0 0.0
        %1679 = vmatprep.subr.mxu0 0.0
        %1680 = vmatpush1.msra.mxu0 0.0
        %1681 = vmatprep.subr.mxu0 0.0
        %1682 = vmatpush1.msra.mxu0 0.0
        %1683 = vmatprep.subr.mxu0 0.0
        %1684 = vmatpush1.msra.mxu0 0.0
        %1685 = vmatprep.subr.mxu0 0.0
        %1686 = vmatpush1.msra.mxu0 0.0
        %1687 = vmatprep.subr.mxu0 0.0
        %1688 = vmatpush1.msra.mxu0 0.0
        %1689 = vmatprep.subr.mxu0 0.0
        %1690 = vmatpush1.msra.mxu0 0.0
        %1691 = vmatprep.subr.mxu0 0.0
        %1692 = vmatpush1.msra.mxu0 0.0
        %1693 = vmatprep.subr.mxu0 0.0
        %1694 = vmatpush1.msra.mxu0 0.0
        %1695 = vmatprep.subr.mxu0 0.0
        %1696 = vmatpush1.msra.mxu0 0.0
        %1697 = vmatprep.subr.mxu0 0.0
        %1698 = vmatpush1.msra.mxu0 0.0
        %1699 = vmatprep.subr.mxu0 0.0
        %1700 = vmatpush1.msra.mxu0 0.0
        %1701 = vmatprep.subr.mxu0 0.0
        %1702 = vmatpush1.msra.mxu0 0.0
        %1703 = vmatprep.subr.mxu0 0.0
        %1704 = vmatpush1.msra.mxu0 0.0
        %1705 = vmatprep.subr.mxu0 0.0
        %1706 = vmatpush1.msra.mxu0 0.0
        %1707 = vmatprep.subr.mxu0 0.0
        %1708 = vmatpush1.msra.mxu0 0.0
        %1709 = vmatprep.subr.mxu0 0.0
        %1710 = vmatpush1.msra.mxu0 0.0
        %1711 = vmatprep.subr.mxu0 0.0
        %1712 = vmatpush1.msra.mxu0 0.0
        %1713 = vmatprep.subr.mxu0 0.0
        %1714 = vmatpush1.msra.mxu0 0.0
        %1715 = vmatprep.subr.mxu0 0.0
        %1716 = vmatpush1.msra.mxu0 0.0
        %1717 = vmatprep.subr.mxu0 0.0
        %1718 = vmatpush1.msra.mxu0 0.0
        %1719 = vmatprep.subr.mxu0 0.0
        %1720 = vmatpush1.msra.mxu0 0.0
        %1721 = vmatprep.subr.mxu0 0.0
        %1722 = vmatpush1.msra.mxu0 0.0
        %1723 = vmatprep.subr.mxu0 0.0
        %1724 = vmatpush1.msra.mxu0 0.0
        %1725 = vmatprep.subr.mxu0 0.0
        %1726 = vmatpush1.msra.mxu0 0.0
        %1727 = vmatprep.mubr.f32.mxu0 0.0
        %v1728 = vand.u32 %v1354, 4294901760
        %1729 = vmatmul.mubr.f32.gmra.mrb[0].mxu0 %v1728
        %v1730 = vpop.f32.mrb[0].mxu0
        %v1731 = vadd.f32 %v1657, %v1730
        %v1732 = vpop.f32.mrb[0].mxu0
        %1733 = vdwg.mxu0
        %1734 = vmatprep.subr.mxu0 0.0
        %v1735 = vand.u32 %v1358, 4294901760
        %1736 = vmatpush1.msra.mxu0 %v1735
        %1737 = vmatprep.subr.mxu0 0.0
        %1738 = vmatpush1.msra.mxu0 0.0
        %1739 = vmatprep.subr.mxu0 0.0
        %1740 = vmatpush1.msra.mxu0 0.0
        %1741 = vmatprep.subr.mxu0 0.0
        %1742 = vmatpush1.msra.mxu0 0.0
        %1743 = vmatprep.subr.mxu0 0.0
        %1744 = vmatpush1.msra.mxu0 0.0
        %1745 = vmatprep.subr.mxu0 0.0
        %1746 = vmatpush1.msra.mxu0 0.0
        %1747 = vmatprep.subr.mxu0 0.0
        %1748 = vmatpush1.msra.mxu0 0.0
        %1749 = vmatprep.subr.mxu0 0.0
        %1750 = vmatpush1.msra.mxu0 0.0
        %1751 = vmatprep.subr.mxu0 0.0
        %1752 = vmatpush1.msra.mxu0 0.0
        %1753 = vmatprep.subr.mxu0 0.0
        %1754 = vmatpush1.msra.mxu0 0.0
        %1755 = vmatprep.subr.mxu0 0.0
        %1756 = vmatpush1.msra.mxu0 0.0
        %1757 = vmatprep.subr.mxu0 0.0
        %1758 = vmatpush1.msra.mxu0 0.0
        %1759 = vmatprep.subr.mxu0 0.0
        %1760 = vmatpush1.msra.mxu0 0.0
        %1761 = vmatprep.subr.mxu0 0.0
        %1762 = vmatpush1.msra.mxu0 0.0
        %1763 = vmatprep.subr.mxu0 0.0
        %1764 = vmatpush1.msra.mxu0 0.0
        %1765 = vmatprep.subr.mxu0 0.0
        %1766 = vmatpush1.msra.mxu0 0.0
        %1767 = vmatprep.subr.mxu0 0.0
        %1768 = vmatpush1.msra.mxu0 0.0
        %1769 = vmatprep.subr.mxu0 0.0
        %1770 = vmatpush1.msra.mxu0 0.0
        %1771 = vmatprep.subr.mxu0 0.0
        %1772 = vmatpush1.msra.mxu0 0.0
        %1773 = vmatprep.subr.mxu0 0.0
        %1774 = vmatpush1.msra.mxu0 0.0
        %1775 = vmatprep.subr.mxu0 0.0
        %1776 = vmatpush1.msra.mxu0 0.0
        %1777 = vmatprep.subr.mxu0 0.0
        %1778 = vmatpush1.msra.mxu0 0.0
        %1779 = vmatprep.subr.mxu0 0.0
        %1780 = vmatpush1.msra.mxu0 0.0
        %1781 = vmatprep.subr.mxu0 0.0
        %1782 = vmatpush1.msra.mxu0 0.0
        %1783 = vmatprep.subr.mxu0 0.0
        %1784 = vmatpush1.msra.mxu0 0.0
        %1785 = vmatprep.subr.mxu0 0.0
        %1786 = vmatpush1.msra.mxu0 0.0
        %1787 = vmatprep.subr.mxu0 0.0
        %1788 = vmatpush1.msra.mxu0 0.0
        %1789 = vmatprep.subr.mxu0 0.0
        %1790 = vmatpush1.msra.mxu0 0.0
        %1791 = vmatprep.subr.mxu0 0.0
        %1792 = vmatpush1.msra.mxu0 0.0
        %1793 = vmatprep.subr.mxu0 0.0
        %1794 = vmatpush1.msra.mxu0 0.0
        %1795 = vmatprep.subr.mxu0 0.0
        %1796 = vmatpush1.msra.mxu0 0.0
        %1797 = vmatprep.subr.mxu0 0.0
        %1798 = vmatpush1.msra.mxu0 0.0
        %1799 = vmatprep.mubr.f32.mxu0 0.0
        %v1800 = vand.u32 %v1354, 4294901760
        %1801 = vmatmul.mubr.f32.gmra.mrb[0].mxu0 %v1800
        %v1802 = vpop.f32.mrb[0].mxu0
        %v1803 = vadd.f32 %v1731, %v1802
        %v1804 = vpop.f32.mrb[0].mxu0
        %1805 = vdwg.mxu0
        %v1806 = vxor.u32 %v1803, 2147483648
        %v1807 = vmul.f32 %v1806, 1.442695
        %v1808 = vpow.pop %v1807
        %v1809 = vadd.f32 %v1808, 1.0
        %v1810 = vrcp.pop %v1809
        %v1811 = vmul.f32 1.0, %v1810
        %v1812 = vlaneseq
        %v1813 = vshrl.u32 %v1812, 7
        %v1814 = vsub.s32 0, %v1813
        %v1815 = vrot.slane %v1811, %v1814
        %1817 = vbcast.lane.b32.xlu0 %v1815, 256
        %v1818 = vpop.permute.xlu0 %1817
        %s1820 = sor.u32 256, 8
        %1821 = vbcast.lane.b32.xlu0 %v1815, %s1820
        %v1822 = vpop.permute.xlu0 %1821
        %s1824 = sor.u32 256, 16
        %1825 = vbcast.lane.b32.xlu0 %v1815, %s1824
        %v1826 = vpop.permute.xlu0 %1825
        %s1828 = sor.u32 256, 24
        %1829 = vbcast.lane.b32.xlu0 %v1815, %s1828
        %v1830 = vpop.permute.xlu0 %1829
        %v1831 = vmul.f32 %v189, %v1818
        %v1832 = vmul.f32 %v190, %v1818
        %v1833 = vmul.f32 %v191, %v1822
        %v1834 = vmul.f32 %v192, %v1822
        %v1835 = vmul.f32 %v193, %v1826
        %v1836 = vmul.f32 %v194, %v1826
        %v1837 = vmul.f32 %v195, %v1830
        %v1838 = vmul.f32 %v196, %v1830
        %1839 = vst [vmem:[%s188] sm:$0xff] %v1831
        %1840 = vst [vmem:[%s188 + $0x8] sm:$0xff] %v1832
        %1841 = vst [vmem:[%s188 + $0x10] sm:$0xff] %v1833
        %1842 = vst [vmem:[%s188 + $0x18] sm:$0xff] %v1834
        %1843 = vst [vmem:[%s188 + $0x20] sm:$0xff] %v1835
        %1844 = vst [vmem:[%s188 + $0x28] sm:$0xff] %v1836
        %1845 = vst [vmem:[%s188 + $0x30] sm:$0xff] %v1837
        %1846 = vst [vmem:[%s188 + $0x38] sm:$0xff] %v1838
        %s1847 = sand.u32 %s96, 1
        %s1848 = scalar_lea.sflag [#allocation4], %s1847
        %s1849 = sand.u32 %s96, 1
        %s1850 = smul.addr %s1849, 64
        %s1851 = scalar_lea.vmem [#allocation5], %s1850
        // Predicated region
        $region37: #{tpu_custom_call.1} parent=31 // pred_check
          %p1852 = pneg %p106
        $region38: #{tpu_custom_call.1} parent=31 // pred_check_branch
          %1854 = sbr.rel (%p1852) target = $region40
        $region39: #{tpu_custom_call.1} parent=31 // pred_region
          %s1856 = ssub.s32 1024, 1024
          %1857 = vsyncadd %s1848, %s1856
          %s1858 = smul.addr %s20, 8
          %s1859 = smul.addr %s1858, 128
          %s1860 = scalar_lea.hbm %s3, %s1859
          %s1861 = sshll.u32 %s1851, 4
          %s1862 = int_to_ptr.vmem [resolvable:$true] %s1861
          %1867 = dma.vmem_to_hbm [thread:$0]  %s1862, 1024, %s1860, %s1848, 256, 256, 16
        $region40: #{tpu_custom_call.1} parent=31 // pred_fallthru
          _
      $region32: #{tpu_custom_call.1} parent=5 // pred_fallthru
        _
      %p1868 = scmp.le.s32.totalorder 2, %s15
      // Predicated region
      $region41: #{tpu_custom_call.1} parent=5 // pred_check
        %p1869 = pneg %p1868
      $region42: #{tpu_custom_call.1} parent=5 // pred_check_branch
        %1871 = sbr.rel (%p1869) target = $region44
      $region43: #{tpu_custom_call.1} parent=5 // pred_region
        %s1872 = ssub.s32 %s15, 2
        // Predicated region
        $region45: #{tpu_custom_call.1} parent=43 // pred_check
          %p1873 = pneg %p112
        $region46: #{tpu_custom_call.1} parent=43 // pred_check_branch
          %1875 = sbr.rel (%p1873) target = $region48
        $region47: #{tpu_custom_call.1} parent=43 // pred_region
          %s1876 = sand.u32 %s97, 1
          %s1877 = scalar_lea.sflag [#allocation4], %s1876
          %s1878 = sand.u32 %s97, 1
          %s1879 = smul.addr %s1878, 64
          %s1880 = scalar_lea.vmem [#allocation5], %s1879
          %1881 = dma.done %s1877, 1024
        $region48: #{tpu_custom_call.1} parent=43 // pred_fallthru
          _
      $region44: #{tpu_custom_call.1} parent=5 // pred_fallthru
        _
    $region6: #{tpu_custom_call.1} parent=1 // loop_footer
      %s19 = sadd.s32 1, %s15
    $region7: #{tpu_custom_call.1} parent=1 // loop_footer_branch
      %14 = sbr.rel target = $region3
    $region8: #{tpu_custom_call.1} parent=1 // loop_exit
      _
    %1882 = vsyncpa [#allocation3], 1
    %s1883 = scalar_lea.sflag [#allocation3], 1
    %1884 = vsyncpa %s1883, 1
    %1885 = vsyncpa [#allocation4], 1
    %s1886 = scalar_lea.sflag [#allocation4], 1
    %1887 = vsyncpa %s1886, 1

</llo_original>
